<compile_context>
chip_gen: v7x
topology: tpu7x:2x2x1
jax: 0.10.0
libtpu: 0.0.40
codegen_flags: <defaults>
</compile_context>

<pallas_src>
import jax
import jax.numpy as jnp
from jax.experimental import pallas as pl
from jax.experimental.pallas import tpu as pltpu

# ---------------------------------------------------------------------------
# Model geometry.
# ---------------------------------------------------------------------------
D_IN = 28 * 28                                  # 784
DIMS = [D_IN, 128, 64, 12, 3, 12, 64, 128, D_IN]
N_LAYERS = len(DIMS) - 1                        # 8 linear layers in the module

# Fused geometry: layers 3 (12->3) and 4 (3->12) have no activation between
# them in the original module, so they are pre-composed into one 12->12 layer.
FUSED_OUT = [128, 64, 12, 12, 64, 128, D_IN]
N_FUSED = len(FUSED_OUT)                        # 7 fused layers
# Each bias sits at a 128-lane-aligned offset inside one packed f32 buffer.
BIAS_OFFS = [0, 128, 256, 384, 512, 640, 768]
BIAS_TOTAL = 768 + D_IN                         # 1552 lanes


def _round_up(a, m):
    return (a + m - 1) // m * m


# ---------------------------------------------------------------------------
# Kernel: full fused MLP on one batch tile.
# ---------------------------------------------------------------------------
def _autoencoder_kernel(x_ref, bias_ref, *refs):
    """refs = (w0, ..., w6, out_ref)."""
    out_ref = refs[-1]
    w_refs = refs[:-1]

    h = x_ref[...].astype(jnp.bfloat16)          # (bt, 784): f32 -> bf16 in-register
    for layer in range(N_FUSED):
        w = w_refs[layer][...]                   # bf16 weight (in, out)
        n = FUSED_OUT[layer]
        off = BIAS_OFFS[layer]
        b = bias_ref[:, off:off + n]             # (1, n) f32, static slice
        acc = jnp.dot(h, w, preferred_element_type=jnp.float32) + b
        if layer < N_FUSED - 1:
            h = jnp.maximum(acc, 0.0).astype(jnp.bfloat16)   # ReLU, back to bf16
        else:
            # Sigmoid via exp + approximate reciprocal (EUP path), store bf16.
            sig = pl.reciprocal(1.0 + jnp.exp(-acc), approx=True)
            out_ref[...] = sig.astype(out_ref.dtype)


# ---------------------------------------------------------------------------
# Wrapper.
# ---------------------------------------------------------------------------
def _prepare_params(params):
    """Compose layers 3 & 4, cast weights to bf16, pack biases into one buffer."""
    ws = [w for (w, _) in params]
    bs = [b for (_, b) in params]

    # Exact composition (no activation between the two layers in the module).
    w34 = ws[3].astype(jnp.float32) @ ws[4].astype(jnp.float32)                  # (12, 12)
    b34 = bs[3].astype(jnp.float32) @ ws[4].astype(jnp.float32) + bs[4].astype(jnp.float32)

    fused_w = [ws[0], ws[1], ws[2], w34, ws[5], ws[6], ws[7]]
    fused_b = [bs[0], bs[1], bs[2], b34, bs[5], bs[6], bs[7]]

    w_list = [w.astype(jnp.bfloat16) for w in fused_w]

    bias_buf = jnp.zeros((1, BIAS_TOTAL), jnp.float32)
    for i, b in enumerate(fused_b):
        off = BIAS_OFFS[i]
        bias_buf = bias_buf.at[0, off:off + b.shape[0]].set(b.astype(jnp.float32))
    return w_list, bias_buf


def autoencoder_forward(x, params, *, batch_tile=1024):
    """x: (B, 784) float32.  params: list of 8 (W, b) with W (in, out), b (out,).

    Returns the (B, 784) bf16 reconstruction (interface change vs f32 for HBM BW).
    """
    B, D = x.shape
    assert D == D_IN

    bt = min(batch_tile, B)
    if bt < B:
        bt = _round_up(bt, 16)       # sublane-aligned tile (bf16 output packing)
    B_pad = _round_up(B, bt)

    w_list, bias_buf = _prepare_params(params)

    x_in = x.astype(jnp.float32)
    if B_pad != B:
        x_in = jnp.pad(x_in, ((0, B_pad - B), (0, 0)))

    in_specs = [
        pl.BlockSpec((bt, D_IN), lambda i: (i, 0)),          # batch tile of x (f32)
        pl.BlockSpec((1, BIAS_TOTAL), lambda i: (0, 0)),     # packed biases (resident)
    ]
    for w in w_list:
        in_specs.append(pl.BlockSpec(w.shape, lambda i: (0, 0)))  # weights (resident)
    out_spec = pl.BlockSpec((bt, D_IN), lambda i: (i, 0))

    out = pl.pallas_call(
        _autoencoder_kernel,
        out_shape=jax.ShapeDtypeStruct((B_pad, D_IN), jnp.bfloat16),
        grid_spec=pltpu.PrefetchScalarGridSpec(
            num_scalar_prefetch=0,
            grid=(B_pad // bt,),
            in_specs=in_specs,
            out_specs=out_spec,
        ),
        compiler_params=pltpu.CompilerParams(
            # Batch axis is embarrassingly parallel -> v7x can shard across TCs.
            dimension_semantics=("parallel",),
            # Large default tile needs more than v5e's 16 MiB scoped default;
            # 48 MiB leaves headroom under v7x's 64 MiB physical VMEM.
            vmem_limit_bytes=48 * 1024 * 1024,
        ),
    )(x_in, bias_buf, *w_list)

    return out if B_pad == B else out[:B]


# ---------------------------------------------------------------------------
# Parameter init + precision-matched pure-JAX reference.
# ---------------------------------------------------------------------------
def init_params(key):
    """Deterministic init matching the layer shapes of the PyTorch module."""
    params = []
    for layer in range(N_LAYERS):
        fan_in, fan_out = DIMS[layer], DIMS[layer + 1]
        key, kw, kb = jax.random.split(key, 3)
        bound = 1.0 / jnp.sqrt(fan_in)
        # Stored as (in, out) so the kernel does x @ W (== PyTorch x @ W_pt.T).
        w = jax.random.uniform(kw, (fan_in, fan_out), jnp.float32, -bound, bound)
        b = jax.random.uniform(kb, (fan_out,), jnp.float32, -bound, bound)
        params.append((w, b))
    return params


def reference_forward(x, params):
    """Pure-JAX reference: unfused 8 layers, bf16 operands, f32 accumulation."""
    h = x.astype(jnp.bfloat16)
    out = None
    for layer, (w, b) in enumerate(params):
        acc = jnp.dot(h, w.astype(jnp.bfloat16),
                      preferred_element_type=jnp.float32) + b.astype(jnp.float32)
        if layer == N_LAYERS - 1:
            out = jax.nn.sigmoid(acc)
            break
        if layer != 3:                       # layer 3 (the 3-dim code) has no ReLU
            acc = jnp.maximum(acc, 0.0)
        h = acc.astype(jnp.bfloat16)
    return out


if __name__ == "__main__":
    key = jax.random.PRNGKey(0)
    key, kx = jax.random.split(key)

    B = 32
    x = jax.random.uniform(kx, (B, D_IN), jnp.float32)   # flattened 28x28 "images"
    params = init_params(key)

    # Single-step grid (tile adapts to the small batch).
    out1 = jax.block_until_ready(autoencoder_forward(x, params))
    # Multi-step grid path: 2 steps of 16 rows, exercises the batch pipelining.
    out2 = jax.block_until_ready(autoencoder_forward(x, params, batch_tile=16))

    ref = reference_forward(x, params)
    assert out1.shape == (B, D_IN) and out1.dtype == jnp.bfloat16
    assert out2.shape == (B, D_IN)

    o1 = out1.astype(jnp.float32)
    o2 = out2.astype(jnp.float32)
    assert jnp.allclose(o1, ref, atol=2e-2, rtol=2e-2), "kernel vs reference mismatch"
    assert jnp.allclose(o2, ref, atol=2e-2, rtol=2e-2), "tiled kernel vs reference mismatch"
    assert jnp.allclose(o1, o2, atol=1e-2), "tiling changed the result beyond bf16 rounding"

    print("KERNEL_OK")
</pallas_src>

<mosaic_0001>
module attributes {stable_mosaic.version = 11 : i64} {
  func.func @_autoencoder_kernel(%arg0: i32, %arg1: memref<32x784xf32, #tpu.memory_space<vmem>>, %arg2: memref<1x1552xf32, #tpu.memory_space<vmem>>, %arg3: memref<784x128xbf16, #tpu.memory_space<vmem>>, %arg4: memref<128x64xbf16, #tpu.memory_space<vmem>>, %arg5: memref<64x12xbf16, #tpu.memory_space<vmem>>, %arg6: memref<12x12xbf16, #tpu.memory_space<vmem>>, %arg7: memref<12x64xbf16, #tpu.memory_space<vmem>>, %arg8: memref<64x128xbf16, #tpu.memory_space<vmem>>, %arg9: memref<128x784xbf16, #tpu.memory_space<vmem>>, %arg10: memref<32x784xbf16, #tpu.memory_space<vmem>>) attributes {dimension_semantics = [#tpu.dimension_semantics<parallel>], iteration_bounds = array<i64: 1>, scalar_prefetch = 0 : i64, scratch_operands = 0 : i64, tpu.core_type = #tpu.core_type<tc>, window_params = [{transform_indices = @transform_0, window_bounds = array<i64: 32, 784>}, {pipeline_mode = #tpu.pipeline_mode<synchronous>, transform_indices = @transform_1, window_bounds = array<i64: 1, 1552>}, {pipeline_mode = #tpu.pipeline_mode<synchronous>, transform_indices = @transform_2, window_bounds = array<i64: 784, 128>}, {pipeline_mode = #tpu.pipeline_mode<synchronous>, transform_indices = @transform_3, window_bounds = array<i64: 128, 64>}, {pipeline_mode = #tpu.pipeline_mode<synchronous>, transform_indices = @transform_4, window_bounds = array<i64: 64, 12>}, {pipeline_mode = #tpu.pipeline_mode<synchronous>, transform_indices = @transform_5, window_bounds = array<i64: 12, 12>}, {pipeline_mode = #tpu.pipeline_mode<synchronous>, transform_indices = @transform_6, window_bounds = array<i64: 12, 64>}, {pipeline_mode = #tpu.pipeline_mode<synchronous>, transform_indices = @transform_7, window_bounds = array<i64: 64, 128>}, {pipeline_mode = #tpu.pipeline_mode<synchronous>, transform_indices = @transform_8, window_bounds = array<i64: 128, 784>}, {transform_indices = @transform_9, window_bounds = array<i64: 32, 784>}]} {
    %c0 = arith.constant 0 : index
    %c0_0 = arith.constant 0 : index
    %0 = vector.load %arg1[%c0, %c0_0] : memref<32x784xf32, #tpu.memory_space<vmem>>, vector<32x784xf32>
    %1 = arith.truncf %0 : vector<32x784xf32> to vector<32x784xbf16>
    %c0_1 = arith.constant 0 : index
    %c0_2 = arith.constant 0 : index
    %2 = vector.load %arg3[%c0_1, %c0_2] : memref<784x128xbf16, #tpu.memory_space<vmem>>, vector<784x128xbf16>
    %c0_3 = arith.constant 0 : index
    %c0_4 = arith.constant 0 : index
    %3 = vector.load %arg2[%c0_3, %c0_4] : memref<1x1552xf32, #tpu.memory_space<vmem>>, vector<1x128xf32>
    %cst = arith.constant dense<0.000000e+00> : vector<32x128xf32>
    %4 = tpu.matmul %1, %2, %cst {dimension_numbers = #tpu.dot_dimension_numbers<[1], [0], [0], [1], [0, 0, 1, 1], [], []>} : vector<32x784xbf16>, vector<784x128xbf16>, vector<32x128xf32> -> vector<32x128xf32>
    %5 = vector.broadcast %3 : vector<1x128xf32> to vector<32x128xf32>
    %6 = arith.addf %4, %5 : vector<32x128xf32>
    %cst_5 = arith.constant 0.000000e+00 : f32
    %7 = vector.broadcast %cst_5 : f32 to vector<32x128xf32>
    %8 = arith.maximumf %6, %7 : vector<32x128xf32>
    %9 = arith.truncf %8 : vector<32x128xf32> to vector<32x128xbf16>
    %c0_6 = arith.constant 0 : index
    %c0_7 = arith.constant 0 : index
    %10 = vector.load %arg4[%c0_6, %c0_7] : memref<128x64xbf16, #tpu.memory_space<vmem>>, vector<128x64xbf16>
    %c0_8 = arith.constant 0 : index
    %c128 = arith.constant 128 : index
    %11 = vector.load %arg2[%c0_8, %c128] : memref<1x1552xf32, #tpu.memory_space<vmem>>, vector<1x64xf32>
    %cst_9 = arith.constant dense<0.000000e+00> : vector<32x64xf32>
    %12 = tpu.matmul %9, %10, %cst_9 {dimension_numbers = #tpu.dot_dimension_numbers<[1], [0], [0], [1], [0, 0, 1, 1], [], []>} : vector<32x128xbf16>, vector<128x64xbf16>, vector<32x64xf32> -> vector<32x64xf32>
    %13 = vector.broadcast %11 : vector<1x64xf32> to vector<32x64xf32>
    %14 = arith.addf %12, %13 : vector<32x64xf32>
    %cst_10 = arith.constant 0.000000e+00 : f32
    %15 = vector.broadcast %cst_10 : f32 to vector<32x64xf32>
    %16 = arith.maximumf %14, %15 : vector<32x64xf32>
    %17 = arith.truncf %16 : vector<32x64xf32> to vector<32x64xbf16>
    %c0_11 = arith.constant 0 : index
    %c0_12 = arith.constant 0 : index
    %18 = vector.load %arg5[%c0_11, %c0_12] : memref<64x12xbf16, #tpu.memory_space<vmem>>, vector<64x12xbf16>
    %c0_13 = arith.constant 0 : index
    %c256 = arith.constant 256 : index
    %19 = vector.load %arg2[%c0_13, %c256] : memref<1x1552xf32, #tpu.memory_space<vmem>>, vector<1x12xf32>
    %cst_14 = arith.constant dense<0.000000e+00> : vector<32x12xf32>
    %20 = tpu.matmul %17, %18, %cst_14 {dimension_numbers = #tpu.dot_dimension_numbers<[1], [0], [0], [1], [0, 0, 1, 1], [], []>} : vector<32x64xbf16>, vector<64x12xbf16>, vector<32x12xf32> -> vector<32x12xf32>
    %21 = vector.broadcast %19 : vector<1x12xf32> to vector<32x12xf32>
    %22 = arith.addf %20, %21 : vector<32x12xf32>
    %cst_15 = arith.constant 0.000000e+00 : f32
    %23 = vector.broadcast %cst_15 : f32 to vector<32x12xf32>
    %24 = arith.maximumf %22, %23 : vector<32x12xf32>
    %25 = arith.truncf %24 : vector<32x12xf32> to vector<32x12xbf16>
    %c0_16 = arith.constant 0 : index
    %c0_17 = arith.constant 0 : index
    %26 = vector.load %arg6[%c0_16, %c0_17] : memref<12x12xbf16, #tpu.memory_space<vmem>>, vector<12x12xbf16>
    %c0_18 = arith.constant 0 : index
    %c384 = arith.constant 384 : index
    %27 = vector.load %arg2[%c0_18, %c384] : memref<1x1552xf32, #tpu.memory_space<vmem>>, vector<1x12xf32>
    %cst_19 = arith.constant dense<0.000000e+00> : vector<32x12xf32>
    %28 = tpu.matmul %25, %26, %cst_19 {dimension_numbers = #tpu.dot_dimension_numbers<[1], [0], [0], [1], [0, 0, 1, 1], [], []>} : vector<32x12xbf16>, vector<12x12xbf16>, vector<32x12xf32> -> vector<32x12xf32>
    %29 = vector.broadcast %27 : vector<1x12xf32> to vector<32x12xf32>
    %30 = arith.addf %28, %29 : vector<32x12xf32>
    %cst_20 = arith.constant 0.000000e+00 : f32
    %31 = vector.broadcast %cst_20 : f32 to vector<32x12xf32>
    %32 = arith.maximumf %30, %31 : vector<32x12xf32>
    %33 = arith.truncf %32 : vector<32x12xf32> to vector<32x12xbf16>
    %c0_21 = arith.constant 0 : index
    %c0_22 = arith.constant 0 : index
    %34 = vector.load %arg7[%c0_21, %c0_22] : memref<12x64xbf16, #tpu.memory_space<vmem>>, vector<12x64xbf16>
    %c0_23 = arith.constant 0 : index
    %c512 = arith.constant 512 : index
    %35 = vector.load %arg2[%c0_23, %c512] : memref<1x1552xf32, #tpu.memory_space<vmem>>, vector<1x64xf32>
    %cst_24 = arith.constant dense<0.000000e+00> : vector<32x64xf32>
    %36 = tpu.matmul %33, %34, %cst_24 {dimension_numbers = #tpu.dot_dimension_numbers<[1], [0], [0], [1], [0, 0, 1, 1], [], []>} : vector<32x12xbf16>, vector<12x64xbf16>, vector<32x64xf32> -> vector<32x64xf32>
    %37 = vector.broadcast %35 : vector<1x64xf32> to vector<32x64xf32>
    %38 = arith.addf %36, %37 : vector<32x64xf32>
    %cst_25 = arith.constant 0.000000e+00 : f32
    %39 = vector.broadcast %cst_25 : f32 to vector<32x64xf32>
    %40 = arith.maximumf %38, %39 : vector<32x64xf32>
    %41 = arith.truncf %40 : vector<32x64xf32> to vector<32x64xbf16>
    %c0_26 = arith.constant 0 : index
    %c0_27 = arith.constant 0 : index
    %42 = vector.load %arg8[%c0_26, %c0_27] : memref<64x128xbf16, #tpu.memory_space<vmem>>, vector<64x128xbf16>
    %c0_28 = arith.constant 0 : index
    %c640 = arith.constant 640 : index
    %43 = vector.load %arg2[%c0_28, %c640] : memref<1x1552xf32, #tpu.memory_space<vmem>>, vector<1x128xf32>
    %cst_29 = arith.constant dense<0.000000e+00> : vector<32x128xf32>
    %44 = tpu.matmul %41, %42, %cst_29 {dimension_numbers = #tpu.dot_dimension_numbers<[1], [0], [0], [1], [0, 0, 1, 1], [], []>} : vector<32x64xbf16>, vector<64x128xbf16>, vector<32x128xf32> -> vector<32x128xf32>
    %45 = vector.broadcast %43 : vector<1x128xf32> to vector<32x128xf32>
    %46 = arith.addf %44, %45 : vector<32x128xf32>
    %cst_30 = arith.constant 0.000000e+00 : f32
    %47 = vector.broadcast %cst_30 : f32 to vector<32x128xf32>
    %48 = arith.maximumf %46, %47 : vector<32x128xf32>
    %49 = arith.truncf %48 : vector<32x128xf32> to vector<32x128xbf16>
    %c0_31 = arith.constant 0 : index
    %c0_32 = arith.constant 0 : index
    %50 = vector.load %arg9[%c0_31, %c0_32] : memref<128x784xbf16, #tpu.memory_space<vmem>>, vector<128x784xbf16>
    %c0_33 = arith.constant 0 : index
    %c768 = arith.constant 768 : index
    %51 = vector.load %arg2[%c0_33, %c768] : memref<1x1552xf32, #tpu.memory_space<vmem>>, vector<1x784xf32>
    %cst_34 = arith.constant dense<0.000000e+00> : vector<32x784xf32>
    %52 = tpu.matmul %49, %50, %cst_34 {dimension_numbers = #tpu.dot_dimension_numbers<[1], [0], [0], [1], [0, 0, 1, 1], [], []>} : vector<32x128xbf16>, vector<128x784xbf16>, vector<32x784xf32> -> vector<32x784xf32>
    %53 = vector.broadcast %51 : vector<1x784xf32> to vector<32x784xf32>
    %54 = arith.addf %52, %53 : vector<32x784xf32>
    %cst_35 = arith.constant 0.000000e+00 : f32
    %55 = vector.broadcast %cst_35 : f32 to vector<32x784xf32>
    %56 = arith.subf %55, %54 : vector<32x784xf32>
    %57 = math.exp %56 : vector<32x784xf32>
    %cst_36 = arith.constant 1.000000e+00 : f32
    %58 = vector.broadcast %cst_36 : f32 to vector<32x784xf32>
    %59 = arith.addf %58, %57 : vector<32x784xf32>
    %60 = tpu.reciprocal %59 {approx = true} : vector<32x784xf32> -> vector<32x784xf32>
    %61 = arith.truncf %60 : vector<32x784xf32> to vector<32x784xbf16>
    %c0_37 = arith.constant 0 : index
    %c0_38 = arith.constant 0 : index
    %62 = vector.load %arg10[%c0_37, %c0_38] : memref<32x784xbf16, #tpu.memory_space<vmem>>, vector<32x784xbf16>
    tpu.vector_store %arg10[%c0_37, %c0_38], %61 {strides = array<i32>} : memref<32x784xbf16, #tpu.memory_space<vmem>>, vector<32x784xbf16>,
    return
  }
  func.func @transform_0(%arg0: i32) -> (i32, i32) {
    %c0_i32 = arith.constant 0 : i32
    %c0_i32_0 = arith.constant 0 : i32
    return %arg0, %c0_i32 : i32, i32
  }
  func.func @transform_1(%arg0: i32) -> (i32, i32) {
    %c0_i32 = arith.constant 0 : i32
    %c0_i32_0 = arith.constant 0 : i32
    %c0_i32_1 = arith.constant 0 : i32
    return %c0_i32, %c0_i32_0 : i32, i32
  }
  func.func @transform_2(%arg0: i32) -> (i32, i32) {
    %c0_i32 = arith.constant 0 : i32
    %c0_i32_0 = arith.constant 0 : i32
    %c0_i32_1 = arith.constant 0 : i32
    return %c0_i32, %c0_i32_0 : i32, i32
  }
  func.func @transform_3(%arg0: i32) -> (i32, i32) {
    %c0_i32 = arith.constant 0 : i32
    %c0_i32_0 = arith.constant 0 : i32
    %c0_i32_1 = arith.constant 0 : i32
    return %c0_i32, %c0_i32_0 : i32, i32
  }
  func.func @transform_4(%arg0: i32) -> (i32, i32) {
    %c0_i32 = arith.constant 0 : i32
    %c0_i32_0 = arith.constant 0 : i32
    %c0_i32_1 = arith.constant 0 : i32
    return %c0_i32, %c0_i32_0 : i32, i32
  }
  func.func @transform_5(%arg0: i32) -> (i32, i32) {
    %c0_i32 = arith.constant 0 : i32
    %c0_i32_0 = arith.constant 0 : i32
    %c0_i32_1 = arith.constant 0 : i32
    return %c0_i32, %c0_i32_0 : i32, i32
  }
  func.func @transform_6(%arg0: i32) -> (i32, i32) {
    %c0_i32 = arith.constant 0 : i32
    %c0_i32_0 = arith.constant 0 : i32
    %c0_i32_1 = arith.constant 0 : i32
    return %c0_i32, %c0_i32_0 : i32, i32
  }
  func.func @transform_7(%arg0: i32) -> (i32, i32) {
    %c0_i32 = arith.constant 0 : i32
    %c0_i32_0 = arith.constant 0 : i32
    %c0_i32_1 = arith.constant 0 : i32
    return %c0_i32, %c0_i32_0 : i32, i32
  }
  func.func @transform_8(%arg0: i32) -> (i32, i32) {
    %c0_i32 = arith.constant 0 : i32
    %c0_i32_0 = arith.constant 0 : i32
    %c0_i32_1 = arith.constant 0 : i32
    return %c0_i32, %c0_i32_0 : i32, i32
  }
  func.func @transform_9(%arg0: i32) -> (i32, i32) {
    %c0_i32 = arith.constant 0 : i32
    %c0_i32_0 = arith.constant 0 : i32
    return %arg0, %c0_i32 : i32, i32
  }
}

</mosaic_0001>

<llo_original>
// kernel: tpu_custom_call.1
$region0: #{tpu_custom_call.1}
  #allocation0 [shape = 'u32[]', space=smem, size = 0x4, offset = 0x4, fixed_abs, tag = 'smem constant byte address 0x4 - core index']
  #allocation1 [shape = 'u32[144,128]{1,0:T(1,128)}', space=vmem, size = 0x12000, scoped, tag = 'internal scratch']
  %s0 = inlined_call_operand.vmem [shape: f32[32,784], index: 0, kind: input, shape index: {}]
  %s1 = inlined_call_operand.vmem [shape: f32[1,1552], index: 1, kind: input, shape index: {}]
  %s2 = inlined_call_operand.vmem [shape: bf16[784,128], index: 2, kind: input, shape index: {}]
  %s3 = inlined_call_operand.vmem [shape: bf16[128,64], index: 3, kind: input, shape index: {}]
  %s4 = inlined_call_operand.vmem [shape: bf16[64,12], index: 4, kind: input, shape index: {}]
  %s5 = inlined_call_operand.vmem [shape: bf16[12,12], index: 5, kind: input, shape index: {}]
  %s6 = inlined_call_operand.vmem [shape: bf16[12,64], index: 6, kind: input, shape index: {}]
  %s7 = inlined_call_operand.vmem [shape: bf16[64,128], index: 7, kind: input, shape index: {}]
  %s8 = inlined_call_operand.vmem [shape: bf16[128,784], index: 8, kind: input, shape index: {}]
  %s9 = inlined_call_operand.hbm [shape: bf16[32,784], index: 9, kind: output, shape index: {}]
  %s10 = sld [smem:[#allocation0]]
  $region46: #{tpu_custom_call.1} parent=0
    _
  %s12 = ssub.s32 1, %s10
  %s13 = scalar_select 0, %s12, %s10
  $region1: #{tpu_custom_call.1} parent=0
    #allocation2 [shape = 'u8[57344]{0}', space=vmem, size = 0xe000, scoped, tag = 'output window, operand 0, single buffered']
    #allocation3 [shape = 's32[1]{0}', space=sflag, size = 0x4, scoped, tag = 'scoped memory for tpu_custom_call.1']
    %14 = vsyncpa [#allocation3], 0
    // Predicated region
    $region2: #{tpu_custom_call.1} parent=1 // pred_check
      _
    $region3: #{tpu_custom_call.1} parent=1 // pred_check_branch
      %16 = sbr.rel (0) target = $region5
    $region4: #{tpu_custom_call.1} parent=1 // pred_region
      _
    $region5: #{tpu_custom_call.1} parent=1 // pred_fallthru
      _
    // Predicated region
    $region6: #{tpu_custom_call.1} parent=1 // pred_check
      _
    $region7: #{tpu_custom_call.1} parent=1 // pred_check_branch
      %18 = sbr.rel (0) target = $region9
    $region8: #{tpu_custom_call.1} parent=1 // pred_region
      _
    $region9: #{tpu_custom_call.1} parent=1 // pred_fallthru
      _
    // Predicated region
    $region10: #{tpu_custom_call.1} parent=1 // pred_check
      _
    $region11: #{tpu_custom_call.1} parent=1 // pred_check_branch
      %20 = sbr.rel (0) target = $region13
    $region12: #{tpu_custom_call.1} parent=1 // pred_region
      _
    $region13: #{tpu_custom_call.1} parent=1 // pred_fallthru
      _
    // Predicated region
    $region14: #{tpu_custom_call.1} parent=1 // pred_check
      _
    $region15: #{tpu_custom_call.1} parent=1 // pred_check_branch
      %22 = sbr.rel (0) target = $region17
    $region16: #{tpu_custom_call.1} parent=1 // pred_region
      _
    $region17: #{tpu_custom_call.1} parent=1 // pred_fallthru
      _
    // Predicated region
    $region18: #{tpu_custom_call.1} parent=1 // pred_check
      _
    $region19: #{tpu_custom_call.1} parent=1 // pred_check_branch
      %24 = sbr.rel (0) target = $region21
    $region20: #{tpu_custom_call.1} parent=1 // pred_region
      _
    $region21: #{tpu_custom_call.1} parent=1 // pred_fallthru
      _
    // Predicated region
    $region22: #{tpu_custom_call.1} parent=1 // pred_check
      _
    $region23: #{tpu_custom_call.1} parent=1 // pred_check_branch
      %26 = sbr.rel (0) target = $region25
    $region24: #{tpu_custom_call.1} parent=1 // pred_region
      _
    $region25: #{tpu_custom_call.1} parent=1 // pred_fallthru
      _
    // Predicated region
    $region26: #{tpu_custom_call.1} parent=1 // pred_check
      _
    $region27: #{tpu_custom_call.1} parent=1 // pred_check_branch
      %28 = sbr.rel (0) target = $region29
    $region28: #{tpu_custom_call.1} parent=1 // pred_region
      _
    $region29: #{tpu_custom_call.1} parent=1 // pred_fallthru
      _
    // Predicated region
    $region30: #{tpu_custom_call.1} parent=1 // pred_check
      _
    $region31: #{tpu_custom_call.1} parent=1 // pred_check_branch
      %30 = sbr.rel (0) target = $region33
    $region32: #{tpu_custom_call.1} parent=1 // pred_region
      _
    $region33: #{tpu_custom_call.1} parent=1 // pred_fallthru
      _
    // Predicated region
    $region34: #{tpu_custom_call.1} parent=1 // pred_check
      _
    $region35: #{tpu_custom_call.1} parent=1 // pred_check_branch
      %32 = sbr.rel (0) target = $region37
    $region36: #{tpu_custom_call.1} parent=1 // pred_region
      _
    $region37: #{tpu_custom_call.1} parent=1 // pred_fallthru
      _
    %v34 = vld [vmem:[%s0] sm:$0xff]
    %v35 = vld [vmem:[%s0 + $0x8] sm:$0xff]
    %v36 = vld [vmem:[%s0 + $0x10] sm:$0xff]
    %v37 = vld [vmem:[%s0 + $0x18] sm:$0xff]
    %v38 = vld [vmem:[%s0 + $0x20] sm:$0xff]
    %v39 = vld [vmem:[%s0 + $0x28] sm:$0xff]
    %v40 = vld [vmem:[%s0 + $0x30] sm:$0xff]
    %v41 = vld [vmem:[%s0 + $0x38] sm:$0xff]
    %v42 = vld [vmem:[%s0 + $0x40] sm:$0xff]
    %v43 = vld [vmem:[%s0 + $0x48] sm:$0xff]
    %v44 = vld [vmem:[%s0 + $0x50] sm:$0xff]
    %v45 = vld [vmem:[%s0 + $0x58] sm:$0xff]
    %v46 = vld [vmem:[%s0 + $0x60] sm:$0xff]
    %v47 = vld [vmem:[%s0 + $0x68] sm:$0xff]
    %v48 = vld [vmem:[%s0 + $0x70] sm:$0xff]
    %v49 = vld [vmem:[%s0 + $0x78] sm:$0xff]
    %v50 = vld [vmem:[%s0 + $0x80] sm:$0xff]
    %v51 = vld [vmem:[%s0 + $0x88] sm:$0xff]
    %v52 = vld [vmem:[%s0 + $0x90] sm:$0xff]
    %v53 = vld [vmem:[%s0 + $0x98] sm:$0xff]
    %v54 = vld [vmem:[%s0 + $0xa0] sm:$0xff]
    %v55 = vld [vmem:[%s0 + $0xa8] sm:$0xff]
    %v56 = vld [vmem:[%s0 + $0xb0] sm:$0xff]
    %v57 = vld [vmem:[%s0 + $0xb8] sm:$0xff]
    %v58 = vld [vmem:[%s0 + $0xc0] sm:$0xff]
    %v59 = vld [vmem:[%s0 + $0xc8] sm:$0xff]
    %v60 = vld [vmem:[%s0 + $0xd0] sm:$0xff]
    %v61 = vld [vmem:[%s0 + $0xd8] sm:$0xff]
    %v62 = vpack.c.bf16 %v41, %v34
    %v63 = vpack.c.bf16 %v42, %v35
    %v64 = vpack.c.bf16 %v43, %v36
    %v65 = vpack.c.bf16 %v44, %v37
    %v66 = vpack.c.bf16 %v45, %v38
    %v67 = vpack.c.bf16 %v46, %v39
    %v68 = vpack.c.bf16 %v47, %v40
    %v69 = vpack.c.bf16 %v55, %v48
    %v70 = vpack.c.bf16 %v56, %v49
    %v71 = vpack.c.bf16 %v57, %v50
    %v72 = vpack.c.bf16 %v58, %v51
    %v73 = vpack.c.bf16 %v59, %v52
    %v74 = vpack.c.bf16 %v60, %v53
    %v75 = vpack.c.bf16 %v61, %v54
    %v76 = vld [vmem:[%s2] sm:$0xf]
    %v77 = vld [vmem:[%s2 + $0x4] sm:$0xf]
    %v78 = vld [vmem:[%s2 + $0x8] sm:$0xf]
    %v79 = vld [vmem:[%s2 + $0xc] sm:$0xf]
    %v80 = vld [vmem:[%s2 + $0x10] sm:$0xf]
    %v81 = vld [vmem:[%s2 + $0x14] sm:$0xf]
    %v82 = vld [vmem:[%s2 + $0x18] sm:$0xf]
    %v83 = vld [vmem:[%s2 + $0x1c] sm:$0xf]
    %v84 = vld [vmem:[%s2 + $0x20] sm:$0xf]
    %v85 = vld [vmem:[%s2 + $0x24] sm:$0xf]
    %v86 = vld [vmem:[%s2 + $0x28] sm:$0xf]
    %v87 = vld [vmem:[%s2 + $0x2c] sm:$0xf]
    %v88 = vld [vmem:[%s2 + $0x30] sm:$0xf]
    %v89 = vld [vmem:[%s2 + $0x34] sm:$0xf]
    %v90 = vld [vmem:[%s2 + $0x38] sm:$0xf]
    %v91 = vld [vmem:[%s2 + $0x3c] sm:$0xf]
    %v92 = vld [vmem:[%s2 + $0x40] sm:$0xf]
    %v93 = vld [vmem:[%s2 + $0x44] sm:$0xf]
    %v94 = vld [vmem:[%s2 + $0x48] sm:$0xf]
    %v95 = vld [vmem:[%s2 + $0x4c] sm:$0xf]
    %v96 = vld [vmem:[%s2 + $0x50] sm:$0xf]
    %v97 = vld [vmem:[%s2 + $0x54] sm:$0xf]
    %v98 = vld [vmem:[%s2 + $0x58] sm:$0xf]
    %v99 = vld [vmem:[%s2 + $0x5c] sm:$0xf]
    %v100 = vld [vmem:[%s2 + $0x60] sm:$0xf]
    %v101 = vld [vmem:[%s2 + $0x64] sm:$0xf]
    %v102 = vld [vmem:[%s2 + $0x68] sm:$0xf]
    %v103 = vld [vmem:[%s2 + $0x6c] sm:$0xf]
    %v104 = vld [vmem:[%s2 + $0x70] sm:$0xf]
    %v105 = vld [vmem:[%s2 + $0x74] sm:$0xf]
    %v106 = vld [vmem:[%s2 + $0x78] sm:$0xf]
    %v107 = vld [vmem:[%s2 + $0x7c] sm:$0xf]
    %v108 = vld [vmem:[%s2 + $0x80] sm:$0xf]
    %v109 = vld [vmem:[%s2 + $0x84] sm:$0xf]
    %v110 = vld [vmem:[%s2 + $0x88] sm:$0xf]
    %v111 = vld [vmem:[%s2 + $0x8c] sm:$0xf]
    %v112 = vld [vmem:[%s2 + $0x90] sm:$0xf]
    %v113 = vld [vmem:[%s2 + $0x94] sm:$0xf]
    %v114 = vld [vmem:[%s2 + $0x98] sm:$0xf]
    %v115 = vld [vmem:[%s2 + $0x9c] sm:$0xf]
    %v116 = vld [vmem:[%s2 + $0xa0] sm:$0xf]
    %v117 = vld [vmem:[%s2 + $0xa4] sm:$0xf]
    %v118 = vld [vmem:[%s2 + $0xa8] sm:$0xf]
    %v119 = vld [vmem:[%s2 + $0xac] sm:$0xf]
    %v120 = vld [vmem:[%s2 + $0xb0] sm:$0xf]
    %v121 = vld [vmem:[%s2 + $0xb4] sm:$0xf]
    %v122 = vld [vmem:[%s2 + $0xb8] sm:$0xf]
    %v123 = vld [vmem:[%s2 + $0xbc] sm:$0xf]
    %v124 = vld [vmem:[%s2 + $0xc0] sm:$0xf]
    %v125 = vld [vmem:[%s2 + $0xc4] sm:$0xf]
    %v126 = vld [vmem:[%s2 + $0xc8] sm:$0xf]
    %v127 = vld [vmem:[%s2 + $0xcc] sm:$0xf]
    %v128 = vld [vmem:[%s2 + $0xd0] sm:$0xf]
    %v129 = vld [vmem:[%s2 + $0xd4] sm:$0xf]
    %v130 = vld [vmem:[%s2 + $0xd8] sm:$0xf]
    %v131 = vld [vmem:[%s2 + $0xdc] sm:$0xf]
    %v132 = vld [vmem:[%s2 + $0xe0] sm:$0xf]
    %v133 = vld [vmem:[%s2 + $0xe4] sm:$0xf]
    %v134 = vld [vmem:[%s2 + $0xe8] sm:$0xf]
    %v135 = vld [vmem:[%s2 + $0xec] sm:$0xf]
    %v136 = vld [vmem:[%s2 + $0xf0] sm:$0xf]
    %v137 = vld [vmem:[%s2 + $0xf4] sm:$0xf]
    %v138 = vld [vmem:[%s2 + $0xf8] sm:$0xf]
    %v139 = vld [vmem:[%s2 + $0xfc] sm:$0xf]
    %v140 = vld [vmem:[%s2 + $0x100] sm:$0xf]
    %v141 = vld [vmem:[%s2 + $0x104] sm:$0xf]
    %v142 = vld [vmem:[%s2 + $0x108] sm:$0xf]
    %v143 = vld [vmem:[%s2 + $0x10c] sm:$0xf]
    %v144 = vld [vmem:[%s2 + $0x110] sm:$0xf]
    %v145 = vld [vmem:[%s2 + $0x114] sm:$0xf]
    %v146 = vld [vmem:[%s2 + $0x118] sm:$0xf]
    %v147 = vld [vmem:[%s2 + $0x11c] sm:$0xf]
    %v148 = vld [vmem:[%s2 + $0x120] sm:$0xf]
    %v149 = vld [vmem:[%s2 + $0x124] sm:$0xf]
    %v150 = vld [vmem:[%s2 + $0x128] sm:$0xf]
    %v151 = vld [vmem:[%s2 + $0x12c] sm:$0xf]
    %v152 = vld [vmem:[%s2 + $0x130] sm:$0xf]
    %v153 = vld [vmem:[%s2 + $0x134] sm:$0xf]
    %v154 = vld [vmem:[%s2 + $0x138] sm:$0xf]
    %v155 = vld [vmem:[%s2 + $0x13c] sm:$0xf]
    %v156 = vld [vmem:[%s2 + $0x140] sm:$0xf]
    %v157 = vld [vmem:[%s2 + $0x144] sm:$0xf]
    %v158 = vld [vmem:[%s2 + $0x148] sm:$0xf]
    %v159 = vld [vmem:[%s2 + $0x14c] sm:$0xf]
    %v160 = vld [vmem:[%s2 + $0x150] sm:$0xf]
    %v161 = vld [vmem:[%s2 + $0x154] sm:$0xf]
    %v162 = vld [vmem:[%s2 + $0x158] sm:$0xf]
    %v163 = vld [vmem:[%s2 + $0x15c] sm:$0xf]
    %v164 = vld [vmem:[%s2 + $0x160] sm:$0xf]
    %v165 = vld [vmem:[%s2 + $0x164] sm:$0xf]
    %v166 = vld [vmem:[%s2 + $0x168] sm:$0xf]
    %v167 = vld [vmem:[%s2 + $0x16c] sm:$0xf]
    %v168 = vld [vmem:[%s2 + $0x170] sm:$0xf]
    %v169 = vld [vmem:[%s2 + $0x174] sm:$0xf]
    %v170 = vld [vmem:[%s2 + $0x178] sm:$0xf]
    %v171 = vld [vmem:[%s2 + $0x17c] sm:$0xf]
    %v172 = vld [vmem:[%s2 + $0x180] sm:$0xf]
    %v173 = vld [vmem:[%s2 + $0x184] sm:$0xf]
    %v174 = vld [vmem:[%s1] sm:$0x1]
    %v176 = vlaneseq
    %v177 = vshrl.u32 %v176, 7
    %v178 = vsub.s32 0, %v177
    %v179 = vrot.slane %v174, %v178
    %v279 = vunpack.c.l.b16 %v76
    %v280 = vunpack.c.l.b16 %v77
    %v281 = vunpack.c.l.b16 %v78
    %v282 = vunpack.c.l.b16 %v79
    %v283 = vunpack.c.l.b16 %v80
    %v284 = vunpack.c.l.b16 %v81
    %v285 = vunpack.c.l.b16 %v82
    %v286 = vunpack.c.l.b16 %v83
    %v287 = vunpack.c.l.b16 %v84
    %v288 = vunpack.c.l.b16 %v85
    %v289 = vunpack.c.l.b16 %v86
    %v290 = vunpack.c.l.b16 %v87
    %v291 = vunpack.c.l.b16 %v88
    %v292 = vunpack.c.l.b16 %v89
    %v293 = vunpack.c.l.b16 %v90
    %v294 = vunpack.c.l.b16 %v91
    %v295 = vunpack.c.l.b16 %v92
    %v296 = vunpack.c.l.b16 %v93
    %v297 = vunpack.c.l.b16 %v94
    %v298 = vunpack.c.l.b16 %v95
    %v299 = vunpack.c.l.b16 %v96
    %v300 = vunpack.c.l.b16 %v97
    %v301 = vunpack.c.l.b16 %v98
    %v302 = vunpack.c.l.b16 %v99
    %v303 = vunpack.c.l.b16 %v100
    %v304 = vunpack.c.l.b16 %v101
    %v305 = vunpack.c.l.b16 %v102
    %v306 = vunpack.c.l.b16 %v103
    %v307 = vunpack.c.l.b16 %v104
    %v308 = vunpack.c.l.b16 %v105
    %v309 = vunpack.c.l.b16 %v106
    %v310 = vunpack.c.l.b16 %v107
    %v311 = vunpack.c.l.b16 %v108
    %v312 = vunpack.c.l.b16 %v109
    %v313 = vunpack.c.l.b16 %v110
    %v314 = vunpack.c.l.b16 %v111
    %v315 = vunpack.c.l.b16 %v112
    %v316 = vunpack.c.l.b16 %v113
    %v317 = vunpack.c.l.b16 %v114
    %v318 = vunpack.c.l.b16 %v115
    %v319 = vunpack.c.l.b16 %v116
    %v320 = vunpack.c.l.b16 %v117
    %v321 = vunpack.c.l.b16 %v118
    %v322 = vunpack.c.l.b16 %v119
    %v323 = vunpack.c.l.b16 %v120
    %v324 = vunpack.c.l.b16 %v121
    %v325 = vunpack.c.l.b16 %v122
    %v326 = vunpack.c.l.b16 %v123
    %v327 = vunpack.c.l.b16 %v124
    %v328 = vunpack.c.l.b16 %v125
    %v329 = vunpack.c.l.b16 %v126
    %v330 = vunpack.c.l.b16 %v127
    %v331 = vunpack.c.l.b16 %v128
    %v332 = vunpack.c.l.b16 %v129
    %v333 = vunpack.c.l.b16 %v130
    %v334 = vunpack.c.l.b16 %v131
    %v335 = vunpack.c.l.b16 %v132
    %v336 = vunpack.c.l.b16 %v133
    %v337 = vunpack.c.l.b16 %v134
    %v338 = vunpack.c.l.b16 %v135
    %v339 = vunpack.c.l.b16 %v136
    %v340 = vunpack.c.l.b16 %v137
    %v341 = vunpack.c.l.b16 %v138
    %v342 = vunpack.c.l.b16 %v139
    %v343 = vunpack.c.l.b16 %v140
    %v344 = vunpack.c.l.b16 %v141
    %v345 = vunpack.c.l.b16 %v142
    %v346 = vunpack.c.l.b16 %v143
    %v347 = vunpack.c.l.b16 %v144
    %v348 = vunpack.c.l.b16 %v145
    %v349 = vunpack.c.l.b16 %v146
    %v350 = vunpack.c.l.b16 %v147
    %v351 = vunpack.c.l.b16 %v148
    %v352 = vunpack.c.l.b16 %v149
    %v353 = vunpack.c.l.b16 %v150
    %v354 = vunpack.c.l.b16 %v151
    %v355 = vunpack.c.l.b16 %v152
    %v356 = vunpack.c.l.b16 %v153
    %v357 = vunpack.c.l.b16 %v154
    %v358 = vunpack.c.l.b16 %v155
    %v359 = vunpack.c.l.b16 %v156
    %v360 = vunpack.c.l.b16 %v157
    %v361 = vunpack.c.l.b16 %v158
    %v362 = vunpack.c.l.b16 %v159
    %v363 = vunpack.c.l.b16 %v160
    %v364 = vunpack.c.l.b16 %v161
    %v365 = vunpack.c.l.b16 %v162
    %v366 = vunpack.c.l.b16 %v163
    %v367 = vunpack.c.l.b16 %v164
    %v368 = vunpack.c.l.b16 %v165
    %v369 = vunpack.c.l.b16 %v166
    %v370 = vunpack.c.l.b16 %v167
    %v371 = vunpack.c.l.b16 %v168
    %v372 = vunpack.c.l.b16 %v169
    %v373 = vunpack.c.l.b16 %v170
    %v374 = vunpack.c.l.b16 %v171
    %v375 = vunpack.c.l.b16 %v172
    %v376 = vunpack.c.l.b16 %v173
    %v377 = vpack.c.b16 %v280, %v279
    %v378 = vpack.c.b16 %v282, %v281
    %v379 = vpack.c.b16 %v284, %v283
    %v380 = vpack.c.b16 %v286, %v285
    %v381 = vpack.c.b16 %v288, %v287
    %v382 = vpack.c.b16 %v290, %v289
    %v383 = vpack.c.b16 %v292, %v291
    %v384 = vpack.c.b16 %v294, %v293
    %v385 = vpack.c.b16 %v296, %v295
    %v386 = vpack.c.b16 %v298, %v297
    %v387 = vpack.c.b16 %v300, %v299
    %v388 = vpack.c.b16 %v302, %v301
    %v389 = vpack.c.b16 %v304, %v303
    %v390 = vpack.c.b16 %v306, %v305
    %v391 = vpack.c.b16 %v308, %v307
    %v392 = vpack.c.b16 %v310, %v309
    %v393 = vpack.c.b16 %v312, %v311
    %v394 = vpack.c.b16 %v314, %v313
    %v395 = vpack.c.b16 %v316, %v315
    %v396 = vpack.c.b16 %v318, %v317
    %v397 = vpack.c.b16 %v320, %v319
    %v398 = vpack.c.b16 %v322, %v321
    %v399 = vpack.c.b16 %v324, %v323
    %v400 = vpack.c.b16 %v326, %v325
    %v401 = vpack.c.b16 %v328, %v327
    %v402 = vpack.c.b16 %v330, %v329
    %v403 = vpack.c.b16 %v332, %v331
    %v404 = vpack.c.b16 %v334, %v333
    %v405 = vpack.c.b16 %v336, %v335
    %v406 = vpack.c.b16 %v338, %v337
    %v407 = vpack.c.b16 %v340, %v339
    %v408 = vpack.c.b16 %v342, %v341
    %v409 = vpack.c.b16 %v344, %v343
    %v410 = vpack.c.b16 %v346, %v345
    %v411 = vpack.c.b16 %v348, %v347
    %v412 = vpack.c.b16 %v350, %v349
    %v413 = vpack.c.b16 %v352, %v351
    %v414 = vpack.c.b16 %v354, %v353
    %v415 = vpack.c.b16 %v356, %v355
    %v416 = vpack.c.b16 %v358, %v357
    %v417 = vpack.c.b16 %v360, %v359
    %v418 = vpack.c.b16 %v362, %v361
    %v419 = vpack.c.b16 %v364, %v363
    %v420 = vpack.c.b16 %v366, %v365
    %v421 = vpack.c.b16 %v368, %v367
    %v422 = vpack.c.b16 %v370, %v369
    %v423 = vpack.c.b16 %v372, %v371
    %v424 = vpack.c.b16 %v374, %v373
    %v425 = vpack.c.b16 %v376, %v375
    %vm475 = vcmask 130048
    %v477 = vsel %vm475, %v68, 0
    %v480 = vsel %vm475, %v75, 0
    %482 = vmatprep.subr.bf16.mxu0 0
    %483 = vmatpush1.bf16.msra.mxu0 %v377
    %484 = vmatprep.subr.bf16.mxu0 0
    %485 = vmatpush1.bf16.msra.mxu0 %v378
    %486 = vmatprep.subr.bf16.mxu0 0
    %487 = vmatpush1.bf16.msra.mxu0 %v379
    %488 = vmatprep.subr.bf16.mxu0 0
    %489 = vmatpush1.bf16.msra.mxu0 %v380
    %490 = vmatprep.subr.bf16.mxu0 0
    %491 = vmatpush1.bf16.msra.mxu0 %v381
    %492 = vmatprep.subr.bf16.mxu0 0
    %493 = vmatpush1.bf16.msra.mxu0 %v382
    %494 = vmatprep.subr.bf16.mxu0 0
    %495 = vmatpush1.bf16.msra.mxu0 %v383
    %496 = vmatprep.subr.bf16.mxu0 0
    %497 = vmatpush1.bf16.msra.mxu0 %v384
    %498 = vmatprep.subr.bf16.mxu0 0
    %499 = vmatpush1.bf16.msra.mxu0 %v385
    %500 = vmatprep.subr.bf16.mxu0 0
    %501 = vmatpush1.bf16.msra.mxu0 %v386
    %502 = vmatprep.subr.bf16.mxu0 0
    %503 = vmatpush1.bf16.msra.mxu0 %v387
    %504 = vmatprep.subr.bf16.mxu0 0
    %505 = vmatpush1.bf16.msra.mxu0 %v388
    %506 = vmatprep.subr.bf16.mxu0 0
    %507 = vmatpush1.bf16.msra.mxu0 %v389
    %508 = vmatprep.subr.bf16.mxu0 0
    %509 = vmatpush1.bf16.msra.mxu0 %v390
    %510 = vmatprep.subr.bf16.mxu0 0
    %511 = vmatpush1.bf16.msra.mxu0 %v391
    %512 = vmatprep.subr.bf16.mxu0 0
    %513 = vmatpush1.bf16.msra.mxu0 %v392
    %514 = vmatprep.mubr.bf16.mxu0 %v63
    %515 = vmatmul.mubr.bf16.gmra.mrb[0].mxu0 %v62
    %v516 = vpop.f32.mrb[0].mxu0
    %v517 = vadd.f32 %v179, %v516
    %v518 = vpop.f32.mrb[0].mxu0
    %v519 = vpop.f32.mrb[0].mxu0
    %v520 = vadd.f32 %v179, %v519
    %v521 = vpop.f32.mrb[0].mxu0
    %522 = vmatprep.mubr.bf16.mxu0 %v70
    %523 = vmatmul.mubr.bf16.gmra.mrb[0].mxu0 %v69
    %v524 = vpop.f32.mrb[0].mxu0
    %v525 = vadd.f32 %v179, %v524
    %v526 = vpop.f32.mrb[0].mxu0
    %v527 = vpop.f32.mrb[0].mxu0
    %v528 = vadd.f32 %v179, %v527
    %v529 = vpop.f32.mrb[0].mxu0
    %530 = vdwg.mxu0
    %531 = vmatprep.subr.bf16.mxu0 0
    %532 = vmatpush1.bf16.msra.mxu0 %v393
    %533 = vmatprep.subr.bf16.mxu0 0
    %534 = vmatpush1.bf16.msra.mxu0 %v394
    %535 = vmatprep.subr.bf16.mxu0 0
    %536 = vmatpush1.bf16.msra.mxu0 %v395
    %537 = vmatprep.subr.bf16.mxu0 0
    %538 = vmatpush1.bf16.msra.mxu0 %v396
    %539 = vmatprep.subr.bf16.mxu0 0
    %540 = vmatpush1.bf16.msra.mxu0 %v397
    %541 = vmatprep.subr.bf16.mxu0 0
    %542 = vmatpush1.bf16.msra.mxu0 %v398
    %543 = vmatprep.subr.bf16.mxu0 0
    %544 = vmatpush1.bf16.msra.mxu0 %v399
    %545 = vmatprep.subr.bf16.mxu0 0
    %546 = vmatpush1.bf16.msra.mxu0 %v400
    %547 = vmatprep.subr.bf16.mxu0 0
    %548 = vmatpush1.bf16.msra.mxu0 %v401
    %549 = vmatprep.subr.bf16.mxu0 0
    %550 = vmatpush1.bf16.msra.mxu0 %v402
    %551 = vmatprep.subr.bf16.mxu0 0
    %552 = vmatpush1.bf16.msra.mxu0 %v403
    %553 = vmatprep.subr.bf16.mxu0 0
    %554 = vmatpush1.bf16.msra.mxu0 %v404
    %555 = vmatprep.subr.bf16.mxu0 0
    %556 = vmatpush1.bf16.msra.mxu0 %v405
    %557 = vmatprep.subr.bf16.mxu0 0
    %558 = vmatpush1.bf16.msra.mxu0 %v406
    %559 = vmatprep.subr.bf16.mxu0 0
    %560 = vmatpush1.bf16.msra.mxu0 %v407
    %561 = vmatprep.subr.bf16.mxu0 0
    %562 = vmatpush1.bf16.msra.mxu0 %v408
    %563 = vmatprep.mubr.bf16.mxu0 %v65
    %564 = vmatmul.mubr.bf16.gmra.mrb[0].mxu0 %v64
    %v565 = vpop.f32.mrb[0].mxu0
    %v566 = vadd.f32 %v517, %v565
    %v567 = vpop.f32.mrb[0].mxu0
    %v568 = vpop.f32.mrb[0].mxu0
    %v569 = vadd.f32 %v520, %v568
    %v570 = vpop.f32.mrb[0].mxu0
    %571 = vmatprep.mubr.bf16.mxu0 %v72
    %572 = vmatmul.mubr.bf16.gmra.mrb[0].mxu0 %v71
    %v573 = vpop.f32.mrb[0].mxu0
    %v574 = vadd.f32 %v525, %v573
    %v575 = vpop.f32.mrb[0].mxu0
    %v576 = vpop.f32.mrb[0].mxu0
    %v577 = vadd.f32 %v528, %v576
    %v578 = vpop.f32.mrb[0].mxu0
    %579 = vdwg.mxu0
    %580 = vmatprep.subr.bf16.mxu0 0
    %581 = vmatpush1.bf16.msra.mxu0 %v409
    %582 = vmatprep.subr.bf16.mxu0 0
    %583 = vmatpush1.bf16.msra.mxu0 %v410
    %584 = vmatprep.subr.bf16.mxu0 0
    %585 = vmatpush1.bf16.msra.mxu0 %v411
    %586 = vmatprep.subr.bf16.mxu0 0
    %587 = vmatpush1.bf16.msra.mxu0 %v412
    %588 = vmatprep.subr.bf16.mxu0 0
    %589 = vmatpush1.bf16.msra.mxu0 %v413
    %590 = vmatprep.subr.bf16.mxu0 0
    %591 = vmatpush1.bf16.msra.mxu0 %v414
    %592 = vmatprep.subr.bf16.mxu0 0
    %593 = vmatpush1.bf16.msra.mxu0 %v415
    %594 = vmatprep.subr.bf16.mxu0 0
    %595 = vmatpush1.bf16.msra.mxu0 %v416
    %596 = vmatprep.subr.bf16.mxu0 0
    %597 = vmatpush1.bf16.msra.mxu0 %v417
    %598 = vmatprep.subr.bf16.mxu0 0
    %599 = vmatpush1.bf16.msra.mxu0 %v418
    %600 = vmatprep.subr.bf16.mxu0 0
    %601 = vmatpush1.bf16.msra.mxu0 %v419
    %602 = vmatprep.subr.bf16.mxu0 0
    %603 = vmatpush1.bf16.msra.mxu0 %v420
    %604 = vmatprep.subr.bf16.mxu0 0
    %605 = vmatpush1.bf16.msra.mxu0 %v421
    %606 = vmatprep.subr.bf16.mxu0 0
    %607 = vmatpush1.bf16.msra.mxu0 %v422
    %608 = vmatprep.subr.bf16.mxu0 0
    %609 = vmatpush1.bf16.msra.mxu0 %v423
    %610 = vmatprep.subr.bf16.mxu0 0
    %611 = vmatpush1.bf16.msra.mxu0 %v424
    %612 = vmatprep.mubr.bf16.mxu0 %v67
    %613 = vmatmul.mubr.bf16.gmra.mrb[0].mxu0 %v66
    %v614 = vpop.f32.mrb[0].mxu0
    %v615 = vadd.f32 %v566, %v614
    %v616 = vpop.f32.mrb[0].mxu0
    %v617 = vpop.f32.mrb[0].mxu0
    %v618 = vadd.f32 %v569, %v617
    %v619 = vpop.f32.mrb[0].mxu0
    %620 = vmatprep.mubr.bf16.mxu0 %v74
    %621 = vmatmul.mubr.bf16.gmra.mrb[0].mxu0 %v73
    %v622 = vpop.f32.mrb[0].mxu0
    %v623 = vadd.f32 %v574, %v622
    %v624 = vpop.f32.mrb[0].mxu0
    %v625 = vpop.f32.mrb[0].mxu0
    %v626 = vadd.f32 %v577, %v625
    %v627 = vpop.f32.mrb[0].mxu0
    %628 = vdwg.mxu0
    %629 = vmatprep.subr.bf16.mxu0 0
    %630 = vmatpush1.bf16.msra.mxu0 %v425
    %631 = vmatprep.subr.bf16.mxu0 0
    %632 = vmatpush1.bf16.msra.mxu0 0
    %633 = vmatprep.subr.bf16.mxu0 0
    %634 = vmatpush1.bf16.msra.mxu0 0
    %635 = vmatprep.subr.bf16.mxu0 0
    %636 = vmatpush1.bf16.msra.mxu0 0
    %637 = vmatprep.subr.bf16.mxu0 0
    %638 = vmatpush1.bf16.msra.mxu0 0
    %639 = vmatprep.subr.bf16.mxu0 0
    %640 = vmatpush1.bf16.msra.mxu0 0
    %641 = vmatprep.subr.bf16.mxu0 0
    %642 = vmatpush1.bf16.msra.mxu0 0
    %643 = vmatprep.subr.bf16.mxu0 0
    %644 = vmatpush1.bf16.msra.mxu0 0
    %645 = vmatprep.subr.bf16.mxu0 0
    %646 = vmatpush1.bf16.msra.mxu0 0
    %647 = vmatprep.subr.bf16.mxu0 0
    %648 = vmatpush1.bf16.msra.mxu0 0
    %649 = vmatprep.subr.bf16.mxu0 0
    %650 = vmatpush1.bf16.msra.mxu0 0
    %651 = vmatprep.subr.bf16.mxu0 0
    %652 = vmatpush1.bf16.msra.mxu0 0
    %653 = vmatprep.subr.bf16.mxu0 0
    %654 = vmatpush1.bf16.msra.mxu0 0
    %655 = vmatprep.subr.bf16.mxu0 0
    %656 = vmatpush1.bf16.msra.mxu0 0
    %657 = vmatprep.subr.bf16.mxu0 0
    %658 = vmatpush1.bf16.msra.mxu0 0
    %659 = vmatprep.subr.bf16.mxu0 0
    %660 = vmatpush1.bf16.msra.mxu0 0
    %661 = vmatprep.mubr.bf16.mxu0 0
    %662 = vmatmul.mubr.bf16.gmra.mrb[0].mxu0 %v477
    %v663 = vpop.f32.mrb[0].mxu0
    %v664 = vadd.f32 %v615, %v663
    %v665 = vpop.f32.mrb[0].mxu0
    %v666 = vpop.f32.mrb[0].mxu0
    %v667 = vadd.f32 %v618, %v666
    %v668 = vpop.f32.mrb[0].mxu0
    %669 = vmatprep.mubr.bf16.mxu0 0
    %670 = vmatmul.mubr.bf16.gmra.mrb[0].mxu0 %v480
    %v671 = vpop.f32.mrb[0].mxu0
    %v672 = vadd.f32 %v623, %v671
    %v673 = vpop.f32.mrb[0].mxu0
    %v674 = vpop.f32.mrb[0].mxu0
    %v675 = vadd.f32 %v626, %v674
    %v676 = vpop.f32.mrb[0].mxu0
    %677 = vdwg.mxu0
    %v678 = vmax.f32 %v664, 0.0
    %v679 = vmax.f32 %v667, 0.0
    %v680 = vmax.f32 %v672, 0.0
    %v681 = vmax.f32 %v675, 0.0
    %v682 = vpack.c.bf16 %v679, %v678
    %v683 = vpack.c.bf16 %v681, %v680
    %v684 = vld [vmem:[%s3] sm:$0xf]
    %v685 = vld [vmem:[%s3 + $0x4] sm:$0xf]
    %v686 = vld [vmem:[%s3 + $0x8] sm:$0xf]
    %v687 = vld [vmem:[%s3 + $0xc] sm:$0xf]
    %v688 = vld [vmem:[%s3 + $0x10] sm:$0xf]
    %v689 = vld [vmem:[%s3 + $0x14] sm:$0xf]
    %v690 = vld [vmem:[%s3 + $0x18] sm:$0xf]
    %v691 = vld [vmem:[%s3 + $0x1c] sm:$0xf]
    %v692 = vld [vmem:[%s3 + $0x20] sm:$0xf]
    %v693 = vld [vmem:[%s3 + $0x24] sm:$0xf]
    %v694 = vld [vmem:[%s3 + $0x28] sm:$0xf]
    %v695 = vld [vmem:[%s3 + $0x2c] sm:$0xf]
    %v696 = vld [vmem:[%s3 + $0x30] sm:$0xf]
    %v697 = vld [vmem:[%s3 + $0x34] sm:$0xf]
    %v698 = vld [vmem:[%s3 + $0x38] sm:$0xf]
    %v699 = vld [vmem:[%s3 + $0x3c] sm:$0xf]
    %v700 = vld [vmem:[%s1 + $0x1] sm:$0x1]
    %v702 = vlaneseq
    %v703 = vshrl.u32 %v702, 7
    %v704 = vsub.s32 0, %v703
    %v705 = vrot.slane %v700, %v704
    %v723 = vunpack.c.l.b16 %v684
    %v724 = vunpack.c.l.b16 %v685
    %v725 = vunpack.c.l.b16 %v686
    %v726 = vunpack.c.l.b16 %v687
    %v727 = vunpack.c.l.b16 %v688
    %v728 = vunpack.c.l.b16 %v689
    %v729 = vunpack.c.l.b16 %v690
    %v730 = vunpack.c.l.b16 %v691
    %v731 = vunpack.c.l.b16 %v692
    %v732 = vunpack.c.l.b16 %v693
    %v733 = vunpack.c.l.b16 %v694
    %v734 = vunpack.c.l.b16 %v695
    %v735 = vunpack.c.l.b16 %v696
    %v736 = vunpack.c.l.b16 %v697
    %v737 = vunpack.c.l.b16 %v698
    %v738 = vunpack.c.l.b16 %v699
    %v739 = vpack.c.b16 %v724, %v723
    %v740 = vpack.c.b16 %v726, %v725
    %v741 = vpack.c.b16 %v728, %v727
    %v742 = vpack.c.b16 %v730, %v729
    %v743 = vpack.c.b16 %v732, %v731
    %v744 = vpack.c.b16 %v734, %v733
    %v745 = vpack.c.b16 %v736, %v735
    %v746 = vpack.c.b16 %v738, %v737
    %755 = vmatprep.subr.bf16.mxu0 0
    %756 = vmatpush1.bf16.msra.mxu0 %v739
    %757 = vmatprep.subr.bf16.mxu0 0
    %758 = vmatpush1.bf16.msra.mxu0 %v740
    %759 = vmatprep.subr.bf16.mxu0 0
    %760 = vmatpush1.bf16.msra.mxu0 %v741
    %761 = vmatprep.subr.bf16.mxu0 0
    %762 = vmatpush1.bf16.msra.mxu0 %v742
    %763 = vmatprep.subr.bf16.mxu0 0
    %764 = vmatpush1.bf16.msra.mxu0 %v743
    %765 = vmatprep.subr.bf16.mxu0 0
    %766 = vmatpush1.bf16.msra.mxu0 %v744
    %767 = vmatprep.subr.bf16.mxu0 0
    %768 = vmatpush1.bf16.msra.mxu0 %v745
    %769 = vmatprep.subr.bf16.mxu0 0
    %770 = vmatpush1.bf16.msra.mxu0 %v746
    %771 = vmatprep.subr.bf16.mxu0 0
    %772 = vmatpush1.bf16.msra.mxu0 0
    %773 = vmatprep.subr.bf16.mxu0 0
    %774 = vmatpush1.bf16.msra.mxu0 0
    %775 = vmatprep.subr.bf16.mxu0 0
    %776 = vmatpush1.bf16.msra.mxu0 0
    %777 = vmatprep.subr.bf16.mxu0 0
    %778 = vmatpush1.bf16.msra.mxu0 0
    %779 = vmatprep.subr.bf16.mxu0 0
    %780 = vmatpush1.bf16.msra.mxu0 0
    %781 = vmatprep.subr.bf16.mxu0 0
    %782 = vmatpush1.bf16.msra.mxu0 0
    %783 = vmatprep.subr.bf16.mxu0 0
    %784 = vmatpush1.bf16.msra.mxu0 0
    %785 = vmatprep.subr.bf16.mxu0 0
    %786 = vmatpush1.bf16.msra.mxu0 0
    %787 = vmatprep.mubr.bf16.mxu0 0
    %788 = vmatmul.mubr.bf16.gmra.mrb[0].mxu0 %v682
    %v789 = vpop.f32.mrb[0].mxu0
    %v790 = vadd.f32 %v705, %v789
    %v791 = vpop.f32.mrb[0].mxu0
    %v792 = vpop.f32.mrb[0].mxu0
    %v793 = vadd.f32 %v705, %v792
    %v794 = vpop.f32.mrb[0].mxu0
    %795 = vmatprep.mubr.bf16.mxu0 0
    %796 = vmatmul.mubr.bf16.gmra.mrb[0].mxu0 %v683
    %v797 = vpop.f32.mrb[0].mxu0
    %v798 = vadd.f32 %v705, %v797
    %v799 = vpop.f32.mrb[0].mxu0
    %v800 = vpop.f32.mrb[0].mxu0
    %v801 = vadd.f32 %v705, %v800
    %v802 = vpop.f32.mrb[0].mxu0
    %803 = vdwg.mxu0
    %v804 = vmax.f32 %v790, 0.0
    %v805 = vmax.f32 %v793, 0.0
    %v806 = vmax.f32 %v798, 0.0
    %v807 = vmax.f32 %v801, 0.0
    %v808 = vpack.c.bf16 %v805, %v804
    %v809 = vpack.c.bf16 %v807, %v806
    %v810 = vld [vmem:[%s4] sm:$0xf]
    %v811 = vld [vmem:[%s4 + $0x4] sm:$0xf]
    %v812 = vld [vmem:[%s4 + $0x8] sm:$0xf]
    %v813 = vld [vmem:[%s4 + $0xc] sm:$0xf]
    %v814 = vld [vmem:[%s4 + $0x10] sm:$0xf]
    %v815 = vld [vmem:[%s4 + $0x14] sm:$0xf]
    %v816 = vld [vmem:[%s4 + $0x18] sm:$0xf]
    %v817 = vld [vmem:[%s4 + $0x1c] sm:$0xf]
    %v818 = vld [vmem:[%s1 + $0x2] sm:$0x1]
    %v820 = vlaneseq
    %v821 = vshrl.u32 %v820, 7
    %v822 = vsub.s32 0, %v821
    %v823 = vrot.slane %v818, %v822
    %v833 = vunpack.c.l.b16 %v810
    %v834 = vunpack.c.l.b16 %v811
    %v835 = vunpack.c.l.b16 %v812
    %v836 = vunpack.c.l.b16 %v813
    %v837 = vunpack.c.l.b16 %v814
    %v838 = vunpack.c.l.b16 %v815
    %v839 = vunpack.c.l.b16 %v816
    %v840 = vunpack.c.l.b16 %v817
    %v841 = vpack.c.b16 %v834, %v833
    %v842 = vpack.c.b16 %v836, %v835
    %v843 = vpack.c.b16 %v838, %v837
    %v844 = vpack.c.b16 %v840, %v839
    %vm849 = vcmask 523264
    %v851 = vsel %vm849, %v808, 0
    %v854 = vsel %vm849, %v809, 0
    %856 = vmatprep.subr.bf16.mxu0 0
    %857 = vmatpush1.bf16.msra.mxu0 %v841
    %858 = vmatprep.subr.bf16.mxu0 0
    %859 = vmatpush1.bf16.msra.mxu0 %v842
    %860 = vmatprep.subr.bf16.mxu0 0
    %861 = vmatpush1.bf16.msra.mxu0 %v843
    %862 = vmatprep.subr.bf16.mxu0 0
    %863 = vmatpush1.bf16.msra.mxu0 %v844
    %864 = vmatprep.subr.bf16.mxu0 0
    %865 = vmatpush1.bf16.msra.mxu0 0
    %866 = vmatprep.subr.bf16.mxu0 0
    %867 = vmatpush1.bf16.msra.mxu0 0
    %868 = vmatprep.subr.bf16.mxu0 0
    %869 = vmatpush1.bf16.msra.mxu0 0
    %870 = vmatprep.subr.bf16.mxu0 0
    %871 = vmatpush1.bf16.msra.mxu0 0
    %872 = vmatprep.subr.bf16.mxu0 0
    %873 = vmatpush1.bf16.msra.mxu0 0
    %874 = vmatprep.subr.bf16.mxu0 0
    %875 = vmatpush1.bf16.msra.mxu0 0
    %876 = vmatprep.subr.bf16.mxu0 0
    %877 = vmatpush1.bf16.msra.mxu0 0
    %878 = vmatprep.subr.bf16.mxu0 0
    %879 = vmatpush1.bf16.msra.mxu0 0
    %880 = vmatprep.subr.bf16.mxu0 0
    %881 = vmatpush1.bf16.msra.mxu0 0
    %882 = vmatprep.subr.bf16.mxu0 0
    %883 = vmatpush1.bf16.msra.mxu0 0
    %884 = vmatprep.subr.bf16.mxu0 0
    %885 = vmatpush1.bf16.msra.mxu0 0
    %886 = vmatprep.subr.bf16.mxu0 0
    %887 = vmatpush1.bf16.msra.mxu0 0
    %888 = vmatprep.mubr.bf16.mxu0 0
    %889 = vmatmul.mubr.bf16.gmra.mrb[0].mxu0 %v851
    %v890 = vpop.f32.mrb[0].mxu0
    %v891 = vadd.f32 %v823, %v890
    %v892 = vpop.f32.mrb[0].mxu0
    %v893 = vpop.f32.mrb[0].mxu0
    %v894 = vadd.f32 %v823, %v893
    %v895 = vpop.f32.mrb[0].mxu0
    %896 = vmatprep.mubr.bf16.mxu0 0
    %897 = vmatmul.mubr.bf16.gmra.mrb[0].mxu0 %v854
    %v898 = vpop.f32.mrb[0].mxu0
    %v899 = vadd.f32 %v823, %v898
    %v900 = vpop.f32.mrb[0].mxu0
    %v901 = vpop.f32.mrb[0].mxu0
    %v902 = vadd.f32 %v823, %v901
    %v903 = vpop.f32.mrb[0].mxu0
    %904 = vdwg.mxu0
    %v905 = vmax.f32 %v891, 0.0
    %v906 = vmax.f32 %v894, 0.0
    %v907 = vmax.f32 %v899, 0.0
    %v908 = vmax.f32 %v902, 0.0
    %v909 = vpack.c.bf16 %v906, %v905
    %v910 = vpack.c.bf16 %v908, %v907
    %v911 = vld [vmem:[%s5] sm:$0xf]
    %v912 = vld [vmem:[%s5 + $0x4] sm:$0x3]
    %v913 = vld [vmem:[%s1 + $0x3] sm:$0x1]
    %v915 = vlaneseq
    %v916 = vshrl.u32 %v915, 7
    %v917 = vsub.s32 0, %v916
    %v918 = vrot.slane %v913, %v917
    %v922 = vunpack.c.l.b16 %v911
    %v923 = vunpack.c.l.b16 %v912
    %v924 = vpack.c.b16 %v923, %v922
    %vm925 = vcmask 97280
    %v927 = vsel %vm925, %v909, 0
    %v930 = vsel %vm925, %v910, 0
    %vm932 = vcmask 1045504
    %v934 = vsel %vm932, %v924, 0
    %936 = vmatprep.subr.bf16.mxu0 0
    %937 = vmatpush1.bf16.msra.mxu0 %v934
    %938 = vmatprep.subr.bf16.mxu0 0
    %939 = vmatpush1.bf16.msra.mxu0 0
    %940 = vmatprep.subr.bf16.mxu0 0
    %941 = vmatpush1.bf16.msra.mxu0 0
    %942 = vmatprep.subr.bf16.mxu0 0
    %943 = vmatpush1.bf16.msra.mxu0 0
    %944 = vmatprep.subr.bf16.mxu0 0
    %945 = vmatpush1.bf16.msra.mxu0 0
    %946 = vmatprep.subr.bf16.mxu0 0
    %947 = vmatpush1.bf16.msra.mxu0 0
    %948 = vmatprep.subr.bf16.mxu0 0
    %949 = vmatpush1.bf16.msra.mxu0 0
    %950 = vmatprep.subr.bf16.mxu0 0
    %951 = vmatpush1.bf16.msra.mxu0 0
    %952 = vmatprep.subr.bf16.mxu0 0
    %953 = vmatpush1.bf16.msra.mxu0 0
    %954 = vmatprep.subr.bf16.mxu0 0
    %955 = vmatpush1.bf16.msra.mxu0 0
    %956 = vmatprep.subr.bf16.mxu0 0
    %957 = vmatpush1.bf16.msra.mxu0 0
    %958 = vmatprep.subr.bf16.mxu0 0
    %959 = vmatpush1.bf16.msra.mxu0 0
    %960 = vmatprep.subr.bf16.mxu0 0
    %961 = vmatpush1.bf16.msra.mxu0 0
    %962 = vmatprep.subr.bf16.mxu0 0
    %963 = vmatpush1.bf16.msra.mxu0 0
    %964 = vmatprep.subr.bf16.mxu0 0
    %965 = vmatpush1.bf16.msra.mxu0 0
    %966 = vmatprep.subr.bf16.mxu0 0
    %967 = vmatpush1.bf16.msra.mxu0 0
    %968 = vmatprep.mubr.bf16.mxu0 0
    %969 = vmatmul.mubr.bf16.gmra.mrb[0].mxu0 %v927
    %v970 = vpop.f32.mrb[0].mxu0
    %v971 = vadd.f32 %v918, %v970
    %v972 = vpop.f32.mrb[0].mxu0
    %v973 = vpop.f32.mrb[0].mxu0
    %v974 = vadd.f32 %v918, %v973
    %v975 = vpop.f32.mrb[0].mxu0
    %976 = vmatprep.mubr.bf16.mxu0 0
    %977 = vmatmul.mubr.bf16.gmra.mrb[0].mxu0 %v930
    %v978 = vpop.f32.mrb[0].mxu0
    %v979 = vadd.f32 %v918, %v978
    %v980 = vpop.f32.mrb[0].mxu0
    %v981 = vpop.f32.mrb[0].mxu0
    %v982 = vadd.f32 %v918, %v981
    %v983 = vpop.f32.mrb[0].mxu0
    %984 = vdwg.mxu0
    %v985 = vmax.f32 %v971, 0.0
    %v986 = vmax.f32 %v974, 0.0
    %v987 = vmax.f32 %v979, 0.0
    %v988 = vmax.f32 %v982, 0.0
    %v989 = vpack.c.bf16 %v986, %v985
    %v990 = vpack.c.bf16 %v988, %v987
    %v991 = vld [vmem:[%s6] sm:$0xf]
    %v992 = vld [vmem:[%s6 + $0x4] sm:$0x3]
    %v993 = vld [vmem:[%s1 + $0x4] sm:$0x1]
    %v995 = vlaneseq
    %v996 = vshrl.u32 %v995, 7
    %v997 = vsub.s32 0, %v996
    %v998 = vrot.slane %v993, %v997
    %v1002 = vunpack.c.l.b16 %v991
    %v1003 = vunpack.c.l.b16 %v992
    %v1004 = vpack.c.b16 %v1003, %v1002
    %v1006 = vsel %vm925, %v989, 0
    %v1009 = vsel %vm925, %v990, 0
    %v1012 = vsel %vm932, %v1004, 0
    %1014 = vmatprep.subr.bf16.mxu0 0
    %1015 = vmatpush1.bf16.msra.mxu0 %v1012
    %1016 = vmatprep.subr.bf16.mxu0 0
    %1017 = vmatpush1.bf16.msra.mxu0 0
    %1018 = vmatprep.subr.bf16.mxu0 0
    %1019 = vmatpush1.bf16.msra.mxu0 0
    %1020 = vmatprep.subr.bf16.mxu0 0
    %1021 = vmatpush1.bf16.msra.mxu0 0
    %1022 = vmatprep.subr.bf16.mxu0 0
    %1023 = vmatpush1.bf16.msra.mxu0 0
    %1024 = vmatprep.subr.bf16.mxu0 0
    %1025 = vmatpush1.bf16.msra.mxu0 0
    %1026 = vmatprep.subr.bf16.mxu0 0
    %1027 = vmatpush1.bf16.msra.mxu0 0
    %1028 = vmatprep.subr.bf16.mxu0 0
    %1029 = vmatpush1.bf16.msra.mxu0 0
    %1030 = vmatprep.subr.bf16.mxu0 0
    %1031 = vmatpush1.bf16.msra.mxu0 0
    %1032 = vmatprep.subr.bf16.mxu0 0
    %1033 = vmatpush1.bf16.msra.mxu0 0
    %1034 = vmatprep.subr.bf16.mxu0 0
    %1035 = vmatpush1.bf16.msra.mxu0 0
    %1036 = vmatprep.subr.bf16.mxu0 0
    %1037 = vmatpush1.bf16.msra.mxu0 0
    %1038 = vmatprep.subr.bf16.mxu0 0
    %1039 = vmatpush1.bf16.msra.mxu0 0
    %1040 = vmatprep.subr.bf16.mxu0 0
    %1041 = vmatpush1.bf16.msra.mxu0 0
    %1042 = vmatprep.subr.bf16.mxu0 0
    %1043 = vmatpush1.bf16.msra.mxu0 0
    %1044 = vmatprep.subr.bf16.mxu0 0
    %1045 = vmatpush1.bf16.msra.mxu0 0
    %1046 = vmatprep.mubr.bf16.mxu0 0
    %1047 = vmatmul.mubr.bf16.gmra.mrb[0].mxu0 %v1006
    %v1048 = vpop.f32.mrb[0].mxu0
    %v1049 = vadd.f32 %v998, %v1048
    %v1050 = vpop.f32.mrb[0].mxu0
    %v1051 = vpop.f32.mrb[0].mxu0
    %v1052 = vadd.f32 %v998, %v1051
    %v1053 = vpop.f32.mrb[0].mxu0
    %1054 = vmatprep.mubr.bf16.mxu0 0
    %1055 = vmatmul.mubr.bf16.gmra.mrb[0].mxu0 %v1009
    %v1056 = vpop.f32.mrb[0].mxu0
    %v1057 = vadd.f32 %v998, %v1056
    %v1058 = vpop.f32.mrb[0].mxu0
    %v1059 = vpop.f32.mrb[0].mxu0
    %v1060 = vadd.f32 %v998, %v1059
    %v1061 = vpop.f32.mrb[0].mxu0
    %1062 = vdwg.mxu0
    %v1063 = vmax.f32 %v1049, 0.0
    %v1064 = vmax.f32 %v1052, 0.0
    %v1065 = vmax.f32 %v1057, 0.0
    %v1066 = vmax.f32 %v1060, 0.0
    %v1067 = vpack.c.bf16 %v1064, %v1063
    %v1068 = vpack.c.bf16 %v1066, %v1065
    %v1069 = vld [vmem:[%s7] sm:$0xf]
    %v1070 = vld [vmem:[%s7 + $0x4] sm:$0xf]
    %v1071 = vld [vmem:[%s7 + $0x8] sm:$0xf]
    %v1072 = vld [vmem:[%s7 + $0xc] sm:$0xf]
    %v1073 = vld [vmem:[%s7 + $0x10] sm:$0xf]
    %v1074 = vld [vmem:[%s7 + $0x14] sm:$0xf]
    %v1075 = vld [vmem:[%s7 + $0x18] sm:$0xf]
    %v1076 = vld [vmem:[%s7 + $0x1c] sm:$0xf]
    %v1077 = vld [vmem:[%s1 + $0x5] sm:$0x1]
    %v1079 = vlaneseq
    %v1080 = vshrl.u32 %v1079, 7
    %v1081 = vsub.s32 0, %v1080
    %v1082 = vrot.slane %v1077, %v1081
    %v1092 = vunpack.c.l.b16 %v1069
    %v1093 = vunpack.c.l.b16 %v1070
    %v1094 = vunpack.c.l.b16 %v1071
    %v1095 = vunpack.c.l.b16 %v1072
    %v1096 = vunpack.c.l.b16 %v1073
    %v1097 = vunpack.c.l.b16 %v1074
    %v1098 = vunpack.c.l.b16 %v1075
    %v1099 = vunpack.c.l.b16 %v1076
    %v1100 = vpack.c.b16 %v1093, %v1092
    %v1101 = vpack.c.b16 %v1095, %v1094
    %v1102 = vpack.c.b16 %v1097, %v1096
    %v1103 = vpack.c.b16 %v1099, %v1098
    %v1109 = vsel %vm849, %v1067, 0
    %v1112 = vsel %vm849, %v1068, 0
    %1114 = vmatprep.subr.bf16.mxu0 0
    %1115 = vmatpush1.bf16.msra.mxu0 %v1100
    %1116 = vmatprep.subr.bf16.mxu0 0
    %1117 = vmatpush1.bf16.msra.mxu0 %v1101
    %1118 = vmatprep.subr.bf16.mxu0 0
    %1119 = vmatpush1.bf16.msra.mxu0 %v1102
    %1120 = vmatprep.subr.bf16.mxu0 0
    %1121 = vmatpush1.bf16.msra.mxu0 %v1103
    %1122 = vmatprep.subr.bf16.mxu0 0
    %1123 = vmatpush1.bf16.msra.mxu0 0
    %1124 = vmatprep.subr.bf16.mxu0 0
    %1125 = vmatpush1.bf16.msra.mxu0 0
    %1126 = vmatprep.subr.bf16.mxu0 0
    %1127 = vmatpush1.bf16.msra.mxu0 0
    %1128 = vmatprep.subr.bf16.mxu0 0
    %1129 = vmatpush1.bf16.msra.mxu0 0
    %1130 = vmatprep.subr.bf16.mxu0 0
    %1131 = vmatpush1.bf16.msra.mxu0 0
    %1132 = vmatprep.subr.bf16.mxu0 0
    %1133 = vmatpush1.bf16.msra.mxu0 0
    %1134 = vmatprep.subr.bf16.mxu0 0
    %1135 = vmatpush1.bf16.msra.mxu0 0
    %1136 = vmatprep.subr.bf16.mxu0 0
    %1137 = vmatpush1.bf16.msra.mxu0 0
    %1138 = vmatprep.subr.bf16.mxu0 0
    %1139 = vmatpush1.bf16.msra.mxu0 0
    %1140 = vmatprep.subr.bf16.mxu0 0
    %1141 = vmatpush1.bf16.msra.mxu0 0
    %1142 = vmatprep.subr.bf16.mxu0 0
    %1143 = vmatpush1.bf16.msra.mxu0 0
    %1144 = vmatprep.subr.bf16.mxu0 0
    %1145 = vmatpush1.bf16.msra.mxu0 0
    %1146 = vmatprep.mubr.bf16.mxu0 0
    %1147 = vmatmul.mubr.bf16.gmra.mrb[0].mxu0 %v1109
    %v1148 = vpop.f32.mrb[0].mxu0
    %v1149 = vadd.f32 %v1082, %v1148
    %v1150 = vpop.f32.mrb[0].mxu0
    %v1151 = vpop.f32.mrb[0].mxu0
    %v1152 = vadd.f32 %v1082, %v1151
    %v1153 = vpop.f32.mrb[0].mxu0
    %1154 = vmatprep.mubr.bf16.mxu0 0
    %1155 = vmatmul.mubr.bf16.gmra.mrb[0].mxu0 %v1112
    %v1156 = vpop.f32.mrb[0].mxu0
    %v1157 = vadd.f32 %v1082, %v1156
    %v1158 = vpop.f32.mrb[0].mxu0
    %v1159 = vpop.f32.mrb[0].mxu0
    %v1160 = vadd.f32 %v1082, %v1159
    %v1161 = vpop.f32.mrb[0].mxu0
    %1162 = vdwg.mxu0
    %v1163 = vmax.f32 %v1149, 0.0
    %v1164 = vmax.f32 %v1152, 0.0
    %v1165 = vmax.f32 %v1157, 0.0
    %v1166 = vmax.f32 %v1160, 0.0
    %v1167 = vpack.c.bf16 %v1164, %v1163
    %v1168 = vpack.c.bf16 %v1166, %v1165
    %v1169 = vld [vmem:[%s8] sm:$0xff]
    %v1170 = vld [vmem:[%s8 + $0x8] sm:$0xff]
    %v1171 = vld [vmem:[%s8 + $0x10] sm:$0xff]
    %v1172 = vld [vmem:[%s8 + $0x18] sm:$0xf]
    %v1173 = vld [vmem:[%s8 + $0x1c] sm:$0xff]
    %v1174 = vld [vmem:[%s8 + $0x24] sm:$0xff]
    %v1175 = vld [vmem:[%s8 + $0x2c] sm:$0xff]
    %v1176 = vld [vmem:[%s8 + $0x34] sm:$0xf]
    %v1177 = vld [vmem:[%s8 + $0x38] sm:$0xff]
    %v1178 = vld [vmem:[%s8 + $0x40] sm:$0xff]
    %v1179 = vld [vmem:[%s8 + $0x48] sm:$0xff]
    %v1180 = vld [vmem:[%s8 + $0x50] sm:$0xf]
    %v1181 = vld [vmem:[%s8 + $0x54] sm:$0xff]
    %v1182 = vld [vmem:[%s8 + $0x5c] sm:$0xff]
    %v1183 = vld [vmem:[%s8 + $0x64] sm:$0xff]
    %v1184 = vld [vmem:[%s8 + $0x6c] sm:$0xf]
    %v1185 = vld [vmem:[%s8 + $0x70] sm:$0xff]
    %v1186 = vld [vmem:[%s8 + $0x78] sm:$0xff]
    %v1187 = vld [vmem:[%s8 + $0x80] sm:$0xff]
    %v1188 = vld [vmem:[%s8 + $0x88] sm:$0xf]
    %v1189 = vld [vmem:[%s8 + $0x8c] sm:$0xff]
    %v1190 = vld [vmem:[%s8 + $0x94] sm:$0xff]
    %v1191 = vld [vmem:[%s8 + $0x9c] sm:$0xff]
    %v1192 = vld [vmem:[%s8 + $0xa4] sm:$0xf]
    %v1193 = vld [vmem:[%s8 + $0xa8] sm:$0xff]
    %v1194 = vld [vmem:[%s8 + $0xb0] sm:$0xff]
    %v1195 = vld [vmem:[%s8 + $0xb8] sm:$0xff]
    %v1196 = vld [vmem:[%s8 + $0xc0] sm:$0xf]
    %v1197 = vld [vmem:[%s8 + $0xc4] sm:$0xff]
    %v1198 = vld [vmem:[%s8 + $0xcc] sm:$0xff]
    %v1199 = vld [vmem:[%s8 + $0xd4] sm:$0xff]
    %v1200 = vld [vmem:[%s8 + $0xdc] sm:$0xf]
    %v1201 = vld [vmem:[%s8 + $0xe0] sm:$0xff]
    %v1202 = vld [vmem:[%s8 + $0xe8] sm:$0xff]
    %v1203 = vld [vmem:[%s8 + $0xf0] sm:$0xff]
    %v1204 = vld [vmem:[%s8 + $0xf8] sm:$0xf]
    %v1205 = vld [vmem:[%s8 + $0xfc] sm:$0xff]
    %v1206 = vld [vmem:[%s8 + $0x104] sm:$0xff]
    %v1207 = vld [vmem:[%s8 + $0x10c] sm:$0xff]
    %v1208 = vld [vmem:[%s8 + $0x114] sm:$0xf]
    %v1209 = vld [vmem:[%s8 + $0x118] sm:$0xff]
    %v1210 = vld [vmem:[%s8 + $0x120] sm:$0xff]
    %v1211 = vld [vmem:[%s8 + $0x128] sm:$0xff]
    %v1212 = vld [vmem:[%s8 + $0x130] sm:$0xf]
    %v1213 = vld [vmem:[%s8 + $0x134] sm:$0xff]
    %v1214 = vld [vmem:[%s8 + $0x13c] sm:$0xff]
    %v1215 = vld [vmem:[%s8 + $0x144] sm:$0xff]
    %v1216 = vld [vmem:[%s8 + $0x14c] sm:$0xf]
    %v1217 = vld [vmem:[%s8 + $0x150] sm:$0xff]
    %v1218 = vld [vmem:[%s8 + $0x158] sm:$0xff]
    %v1219 = vld [vmem:[%s8 + $0x160] sm:$0xff]
    %v1220 = vld [vmem:[%s8 + $0x168] sm:$0xf]
    %v1221 = vld [vmem:[%s8 + $0x16c] sm:$0xff]
    %v1222 = vld [vmem:[%s8 + $0x174] sm:$0xff]
    %v1223 = vld [vmem:[%s8 + $0x17c] sm:$0xff]
    %v1224 = vld [vmem:[%s8 + $0x184] sm:$0xf]
    %v1225 = vld [vmem:[%s8 + $0x188] sm:$0xff]
    %v1226 = vld [vmem:[%s8 + $0x190] sm:$0xff]
    %v1227 = vld [vmem:[%s8 + $0x198] sm:$0xff]
    %v1228 = vld [vmem:[%s8 + $0x1a0] sm:$0xf]
    %v1229 = vld [vmem:[%s8 + $0x1a4] sm:$0xff]
    %v1230 = vld [vmem:[%s8 + $0x1ac] sm:$0xff]
    %v1231 = vld [vmem:[%s8 + $0x1b4] sm:$0xff]
    %v1232 = vld [vmem:[%s8 + $0x1bc] sm:$0xf]
    %v1233 = vld [vmem:[%s1 + $0x6] sm:$0x7f]
    %v1235 = vlaneseq
    %v1236 = vshrl.u32 %v1235, 7
    %v1237 = vsub.s32 0, %v1236
    %v1238 = vrot.slane %v1233, %v1237
    %v1239 = vlaneseq
    %v1240 = vshrl.u32 %v1239, 7
    %v1241 = vsub.s32 1, %v1240
    %v1242 = vrot.slane %v1233, %v1241
    %v1243 = vlaneseq
    %v1244 = vshrl.u32 %v1243, 7
    %v1245 = vsub.s32 2, %v1244
    %v1246 = vrot.slane %v1233, %v1245
    %v1247 = vlaneseq
    %v1248 = vshrl.u32 %v1247, 7
    %v1249 = vsub.s32 3, %v1248
    %v1250 = vrot.slane %v1233, %v1249
    %v1251 = vlaneseq
    %v1252 = vshrl.u32 %v1251, 7
    %v1253 = vsub.s32 4, %v1252
    %v1254 = vrot.slane %v1233, %v1253
    %v1255 = vlaneseq
    %v1256 = vshrl.u32 %v1255, 7
    %v1257 = vsub.s32 5, %v1256
    %v1258 = vrot.slane %v1233, %v1257
    %v1259 = vlaneseq
    %v1260 = vshrl.u32 %v1259, 7
    %v1261 = vsub.s32 6, %v1260
    %v1262 = vrot.slane %v1233, %v1261
    %v1334 = vunpack.c.l.b16 %v1169
    %v1335 = vunpack.c.h.b16 %v1169
    %v1336 = vunpack.c.l.b16 %v1170
    %v1337 = vunpack.c.h.b16 %v1170
    %v1338 = vunpack.c.l.b16 %v1171
    %v1339 = vunpack.c.h.b16 %v1171
    %v1340 = vunpack.c.l.b16 %v1172
    %v1341 = vunpack.c.l.b16 %v1173
    %v1342 = vunpack.c.h.b16 %v1173
    %v1343 = vunpack.c.l.b16 %v1174
    %v1344 = vunpack.c.h.b16 %v1174
    %v1345 = vunpack.c.l.b16 %v1175
    %v1346 = vunpack.c.h.b16 %v1175
    %v1347 = vunpack.c.l.b16 %v1176
    %v1348 = vunpack.c.l.b16 %v1177
    %v1349 = vunpack.c.h.b16 %v1177
    %v1350 = vunpack.c.l.b16 %v1178
    %v1351 = vunpack.c.h.b16 %v1178
    %v1352 = vunpack.c.l.b16 %v1179
    %v1353 = vunpack.c.h.b16 %v1179
    %v1354 = vunpack.c.l.b16 %v1180
    %v1355 = vunpack.c.l.b16 %v1181
    %v1356 = vunpack.c.h.b16 %v1181
    %v1357 = vunpack.c.l.b16 %v1182
    %v1358 = vunpack.c.h.b16 %v1182
    %v1359 = vunpack.c.l.b16 %v1183
    %v1360 = vunpack.c.h.b16 %v1183
    %v1361 = vunpack.c.l.b16 %v1184
    %v1362 = vunpack.c.l.b16 %v1185
    %v1363 = vunpack.c.h.b16 %v1185
    %v1364 = vunpack.c.l.b16 %v1186
    %v1365 = vunpack.c.h.b16 %v1186
    %v1366 = vunpack.c.l.b16 %v1187
    %v1367 = vunpack.c.h.b16 %v1187
    %v1368 = vunpack.c.l.b16 %v1188
    %v1369 = vunpack.c.l.b16 %v1189
    %v1370 = vunpack.c.h.b16 %v1189
    %v1371 = vunpack.c.l.b16 %v1190
    %v1372 = vunpack.c.h.b16 %v1190
    %v1373 = vunpack.c.l.b16 %v1191
    %v1374 = vunpack.c.h.b16 %v1191
    %v1375 = vunpack.c.l.b16 %v1192
    %v1376 = vunpack.c.l.b16 %v1193
    %v1377 = vunpack.c.h.b16 %v1193
    %v1378 = vunpack.c.l.b16 %v1194
    %v1379 = vunpack.c.h.b16 %v1194
    %v1380 = vunpack.c.l.b16 %v1195
    %v1381 = vunpack.c.h.b16 %v1195
    %v1382 = vunpack.c.l.b16 %v1196
    %v1383 = vunpack.c.l.b16 %v1197
    %v1384 = vunpack.c.h.b16 %v1197
    %v1385 = vunpack.c.l.b16 %v1198
    %v1386 = vunpack.c.h.b16 %v1198
    %v1387 = vunpack.c.l.b16 %v1199
    %v1388 = vunpack.c.h.b16 %v1199
    %v1389 = vunpack.c.l.b16 %v1200
    %v1390 = vunpack.c.l.b16 %v1201
    %v1391 = vunpack.c.h.b16 %v1201
    %v1392 = vunpack.c.l.b16 %v1202
    %v1393 = vunpack.c.h.b16 %v1202
    %v1394 = vunpack.c.l.b16 %v1203
    %v1395 = vunpack.c.h.b16 %v1203
    %v1396 = vunpack.c.l.b16 %v1204
    %v1397 = vunpack.c.l.b16 %v1205
    %v1398 = vunpack.c.h.b16 %v1205
    %v1399 = vunpack.c.l.b16 %v1206
    %v1400 = vunpack.c.h.b16 %v1206
    %v1401 = vunpack.c.l.b16 %v1207
    %v1402 = vunpack.c.h.b16 %v1207
    %v1403 = vunpack.c.l.b16 %v1208
    %v1404 = vunpack.c.l.b16 %v1209
    %v1405 = vunpack.c.h.b16 %v1209
    %v1406 = vunpack.c.l.b16 %v1210
    %v1407 = vunpack.c.h.b16 %v1210
    %v1408 = vunpack.c.l.b16 %v1211
    %v1409 = vunpack.c.h.b16 %v1211
    %v1410 = vunpack.c.l.b16 %v1212
    %v1411 = vunpack.c.l.b16 %v1213
    %v1412 = vunpack.c.h.b16 %v1213
    %v1413 = vunpack.c.l.b16 %v1214
    %v1414 = vunpack.c.h.b16 %v1214
    %v1415 = vunpack.c.l.b16 %v1215
    %v1416 = vunpack.c.h.b16 %v1215
    %v1417 = vunpack.c.l.b16 %v1216
    %v1418 = vunpack.c.l.b16 %v1217
    %v1419 = vunpack.c.h.b16 %v1217
    %v1420 = vunpack.c.l.b16 %v1218
    %v1421 = vunpack.c.h.b16 %v1218
    %v1422 = vunpack.c.l.b16 %v1219
    %v1423 = vunpack.c.h.b16 %v1219
    %v1424 = vunpack.c.l.b16 %v1220
    %v1425 = vunpack.c.l.b16 %v1221
    %v1426 = vunpack.c.h.b16 %v1221
    %v1427 = vunpack.c.l.b16 %v1222
    %v1428 = vunpack.c.h.b16 %v1222
    %v1429 = vunpack.c.l.b16 %v1223
    %v1430 = vunpack.c.h.b16 %v1223
    %v1431 = vunpack.c.l.b16 %v1224
    %v1432 = vunpack.c.l.b16 %v1225
    %v1433 = vunpack.c.h.b16 %v1225
    %v1434 = vunpack.c.l.b16 %v1226
    %v1435 = vunpack.c.h.b16 %v1226
    %v1436 = vunpack.c.l.b16 %v1227
    %v1437 = vunpack.c.h.b16 %v1227
    %v1438 = vunpack.c.l.b16 %v1228
    %v1439 = vunpack.c.l.b16 %v1229
    %v1440 = vunpack.c.h.b16 %v1229
    %v1441 = vunpack.c.l.b16 %v1230
    %v1442 = vunpack.c.h.b16 %v1230
    %v1443 = vunpack.c.l.b16 %v1231
    %v1444 = vunpack.c.h.b16 %v1231
    %v1445 = vunpack.c.l.b16 %v1232
    %v1446 = vpack.c.b16 %v1341, %v1334
    %v1447 = vpack.c.b16 %v1342, %v1335
    %v1448 = vpack.c.b16 %v1343, %v1336
    %v1449 = vpack.c.b16 %v1344, %v1337
    %v1450 = vpack.c.b16 %v1345, %v1338
    %v1451 = vpack.c.b16 %v1346, %v1339
    %v1452 = vpack.c.b16 %v1347, %v1340
    %v1453 = vpack.c.b16 %v1355, %v1348
    %v1454 = vpack.c.b16 %v1356, %v1349
    %v1455 = vpack.c.b16 %v1357, %v1350
    %v1456 = vpack.c.b16 %v1358, %v1351
    %v1457 = vpack.c.b16 %v1359, %v1352
    %v1458 = vpack.c.b16 %v1360, %v1353
    %v1459 = vpack.c.b16 %v1361, %v1354
    %v1460 = vpack.c.b16 %v1369, %v1362
    %v1461 = vpack.c.b16 %v1370, %v1363
    %v1462 = vpack.c.b16 %v1371, %v1364
    %v1463 = vpack.c.b16 %v1372, %v1365
    %v1464 = vpack.c.b16 %v1373, %v1366
    %v1465 = vpack.c.b16 %v1374, %v1367
    %v1466 = vpack.c.b16 %v1375, %v1368
    %v1467 = vpack.c.b16 %v1383, %v1376
    %v1468 = vpack.c.b16 %v1384, %v1377
    %v1469 = vpack.c.b16 %v1385, %v1378
    %v1470 = vpack.c.b16 %v1386, %v1379
    %v1471 = vpack.c.b16 %v1387, %v1380
    %v1472 = vpack.c.b16 %v1388, %v1381
    %v1473 = vpack.c.b16 %v1389, %v1382
    %v1474 = vpack.c.b16 %v1397, %v1390
    %v1475 = vpack.c.b16 %v1398, %v1391
    %v1476 = vpack.c.b16 %v1399, %v1392
    %v1477 = vpack.c.b16 %v1400, %v1393
    %v1478 = vpack.c.b16 %v1401, %v1394
    %v1479 = vpack.c.b16 %v1402, %v1395
    %v1480 = vpack.c.b16 %v1403, %v1396
    %v1481 = vpack.c.b16 %v1411, %v1404
    %v1482 = vpack.c.b16 %v1412, %v1405
    %v1483 = vpack.c.b16 %v1413, %v1406
    %v1484 = vpack.c.b16 %v1414, %v1407
    %v1485 = vpack.c.b16 %v1415, %v1408
    %v1486 = vpack.c.b16 %v1416, %v1409
    %v1487 = vpack.c.b16 %v1417, %v1410
    %v1488 = vpack.c.b16 %v1425, %v1418
    %v1489 = vpack.c.b16 %v1426, %v1419
    %v1490 = vpack.c.b16 %v1427, %v1420
    %v1491 = vpack.c.b16 %v1428, %v1421
    %v1492 = vpack.c.b16 %v1429, %v1422
    %v1493 = vpack.c.b16 %v1430, %v1423
    %v1494 = vpack.c.b16 %v1431, %v1424
    %v1495 = vpack.c.b16 %v1439, %v1432
    %v1496 = vpack.c.b16 %v1440, %v1433
    %v1497 = vpack.c.b16 %v1441, %v1434
    %v1498 = vpack.c.b16 %v1442, %v1435
    %v1499 = vpack.c.b16 %v1443, %v1436
    %v1500 = vpack.c.b16 %v1444, %v1437
    %v1501 = vpack.c.b16 %v1445, %v1438
    %1558 = vmatprep.subr.bf16.mxu0 %v1447
    %1559 = vmatpush1.bf16.msra.mxu0 %v1446
    %1560 = vmatprep.subr.bf16.mxu0 %v1454
    %1561 = vmatpush1.bf16.msra.mxu0 %v1453
    %1562 = vmatprep.subr.bf16.mxu0 %v1461
    %1563 = vmatpush1.bf16.msra.mxu0 %v1460
    %1564 = vmatprep.subr.bf16.mxu0 %v1468
    %1565 = vmatpush1.bf16.msra.mxu0 %v1467
    %1566 = vmatprep.subr.bf16.mxu0 %v1475
    %1567 = vmatpush1.bf16.msra.mxu0 %v1474
    %1568 = vmatprep.subr.bf16.mxu0 %v1482
    %1569 = vmatpush1.bf16.msra.mxu0 %v1481
    %1570 = vmatprep.subr.bf16.mxu0 %v1489
    %1571 = vmatpush1.bf16.msra.mxu0 %v1488
    %1572 = vmatprep.subr.bf16.mxu0 %v1496
    %1573 = vmatpush1.bf16.msra.mxu0 %v1495
    %1574 = vmatprep.subr.bf16.mxu0 0
    %1575 = vmatpush1.bf16.msra.mxu0 0
    %1576 = vmatprep.subr.bf16.mxu0 0
    %1577 = vmatpush1.bf16.msra.mxu0 0
    %1578 = vmatprep.subr.bf16.mxu0 0
    %1579 = vmatpush1.bf16.msra.mxu0 0
    %1580 = vmatprep.subr.bf16.mxu0 0
    %1581 = vmatpush1.bf16.msra.mxu0 0
    %1582 = vmatprep.subr.bf16.mxu0 0
    %1583 = vmatpush1.bf16.msra.mxu0 0
    %1584 = vmatprep.subr.bf16.mxu0 0
    %1585 = vmatpush1.bf16.msra.mxu0 0
    %1586 = vmatprep.subr.bf16.mxu0 0
    %1587 = vmatpush1.bf16.msra.mxu0 0
    %1588 = vmatprep.subr.bf16.mxu0 0
    %1589 = vmatpush1.bf16.msra.mxu0 0
    %1590 = vmatprep.mubr.bf16.mxu0 0
    %1591 = vmatmul.mubr.bf16.gmra.mrb[0].mxu0 %v1167
    %v1592 = vpop.f32.mrb[0].mxu0
    %v1593 = vadd.f32 %v1238, %v1592
    %v1594 = vpop.f32.mrb[0].mxu0
    %v1595 = vadd.f32 %v1242, %v1594
    %v1596 = vpop.f32.mrb[0].mxu0
    %v1597 = vadd.f32 %v1238, %v1596
    %v1598 = vpop.f32.mrb[0].mxu0
    %v1599 = vadd.f32 %v1242, %v1598
    %1600 = vmatprep.mubr.bf16.mxu0 0
    %1601 = vmatmul.mubr.bf16.gmra.mrb[0].mxu0 %v1168
    %v1602 = vpop.f32.mrb[0].mxu0
    %v1603 = vadd.f32 %v1238, %v1602
    %v1604 = vpop.f32.mrb[0].mxu0
    %v1605 = vadd.f32 %v1242, %v1604
    %v1606 = vpop.f32.mrb[0].mxu0
    %v1607 = vadd.f32 %v1238, %v1606
    %v1608 = vpop.f32.mrb[0].mxu0
    %v1609 = vadd.f32 %v1242, %v1608
    %1610 = vdwg.mxu0
    %1611 = vmatprep.subr.bf16.mxu0 %v1449
    %1612 = vmatpush1.bf16.msra.mxu0 %v1448
    %1613 = vmatprep.subr.bf16.mxu0 %v1456
    %1614 = vmatpush1.bf16.msra.mxu0 %v1455
    %1615 = vmatprep.subr.bf16.mxu0 %v1463
    %1616 = vmatpush1.bf16.msra.mxu0 %v1462
    %1617 = vmatprep.subr.bf16.mxu0 %v1470
    %1618 = vmatpush1.bf16.msra.mxu0 %v1469
    %1619 = vmatprep.subr.bf16.mxu0 %v1477
    %1620 = vmatpush1.bf16.msra.mxu0 %v1476
    %1621 = vmatprep.subr.bf16.mxu0 %v1484
    %1622 = vmatpush1.bf16.msra.mxu0 %v1483
    %1623 = vmatprep.subr.bf16.mxu0 %v1491
    %1624 = vmatpush1.bf16.msra.mxu0 %v1490
    %1625 = vmatprep.subr.bf16.mxu0 %v1498
    %1626 = vmatpush1.bf16.msra.mxu0 %v1497
    %1627 = vmatprep.subr.bf16.mxu0 0
    %1628 = vmatpush1.bf16.msra.mxu0 0
    %1629 = vmatprep.subr.bf16.mxu0 0
    %1630 = vmatpush1.bf16.msra.mxu0 0
    %1631 = vmatprep.subr.bf16.mxu0 0
    %1632 = vmatpush1.bf16.msra.mxu0 0
    %1633 = vmatprep.subr.bf16.mxu0 0
    %1634 = vmatpush1.bf16.msra.mxu0 0
    %1635 = vmatprep.subr.bf16.mxu0 0
    %1636 = vmatpush1.bf16.msra.mxu0 0
    %1637 = vmatprep.subr.bf16.mxu0 0
    %1638 = vmatpush1.bf16.msra.mxu0 0
    %1639 = vmatprep.subr.bf16.mxu0 0
    %1640 = vmatpush1.bf16.msra.mxu0 0
    %1641 = vmatprep.subr.bf16.mxu0 0
    %1642 = vmatpush1.bf16.msra.mxu0 0
    %1643 = vmatprep.mubr.bf16.mxu0 0
    %1644 = vmatmul.mubr.bf16.gmra.mrb[0].mxu0 %v1167
    %v1645 = vpop.f32.mrb[0].mxu0
    %v1646 = vadd.f32 %v1246, %v1645
    %v1647 = vpop.f32.mrb[0].mxu0
    %v1648 = vadd.f32 %v1250, %v1647
    %v1649 = vpop.f32.mrb[0].mxu0
    %v1650 = vadd.f32 %v1246, %v1649
    %v1651 = vpop.f32.mrb[0].mxu0
    %v1652 = vadd.f32 %v1250, %v1651
    %1653 = vmatprep.mubr.bf16.mxu0 0
    %1654 = vmatmul.mubr.bf16.gmra.mrb[0].mxu0 %v1168
    %v1655 = vpop.f32.mrb[0].mxu0
    %v1656 = vadd.f32 %v1246, %v1655
    %v1657 = vpop.f32.mrb[0].mxu0
    %v1658 = vadd.f32 %v1250, %v1657
    %v1659 = vpop.f32.mrb[0].mxu0
    %v1660 = vadd.f32 %v1246, %v1659
    %v1661 = vpop.f32.mrb[0].mxu0
    %v1662 = vadd.f32 %v1250, %v1661
    %1663 = vdwg.mxu0
    %1664 = vmatprep.subr.bf16.mxu0 %v1451
    %1665 = vmatpush1.bf16.msra.mxu0 %v1450
    %1666 = vmatprep.subr.bf16.mxu0 %v1458
    %1667 = vmatpush1.bf16.msra.mxu0 %v1457
    %1668 = vmatprep.subr.bf16.mxu0 %v1465
    %1669 = vmatpush1.bf16.msra.mxu0 %v1464
    %1670 = vmatprep.subr.bf16.mxu0 %v1472
    %1671 = vmatpush1.bf16.msra.mxu0 %v1471
    %1672 = vmatprep.subr.bf16.mxu0 %v1479
    %1673 = vmatpush1.bf16.msra.mxu0 %v1478
    %1674 = vmatprep.subr.bf16.mxu0 %v1486
    %1675 = vmatpush1.bf16.msra.mxu0 %v1485
    %1676 = vmatprep.subr.bf16.mxu0 %v1493
    %1677 = vmatpush1.bf16.msra.mxu0 %v1492
    %1678 = vmatprep.subr.bf16.mxu0 %v1500
    %1679 = vmatpush1.bf16.msra.mxu0 %v1499
    %1680 = vmatprep.subr.bf16.mxu0 0
    %1681 = vmatpush1.bf16.msra.mxu0 0
    %1682 = vmatprep.subr.bf16.mxu0 0
    %1683 = vmatpush1.bf16.msra.mxu0 0
    %1684 = vmatprep.subr.bf16.mxu0 0
    %1685 = vmatpush1.bf16.msra.mxu0 0
    %1686 = vmatprep.subr.bf16.mxu0 0
    %1687 = vmatpush1.bf16.msra.mxu0 0
    %1688 = vmatprep.subr.bf16.mxu0 0
    %1689 = vmatpush1.bf16.msra.mxu0 0
    %1690 = vmatprep.subr.bf16.mxu0 0
    %1691 = vmatpush1.bf16.msra.mxu0 0
    %1692 = vmatprep.subr.bf16.mxu0 0
    %1693 = vmatpush1.bf16.msra.mxu0 0
    %1694 = vmatprep.subr.bf16.mxu0 0
    %1695 = vmatpush1.bf16.msra.mxu0 0
    %1696 = vmatprep.mubr.bf16.mxu0 0
    %1697 = vmatmul.mubr.bf16.gmra.mrb[0].mxu0 %v1167
    %v1698 = vpop.f32.mrb[0].mxu0
    %v1699 = vadd.f32 %v1254, %v1698
    %v1700 = vpop.f32.mrb[0].mxu0
    %v1701 = vadd.f32 %v1258, %v1700
    %v1702 = vpop.f32.mrb[0].mxu0
    %v1703 = vadd.f32 %v1254, %v1702
    %v1704 = vpop.f32.mrb[0].mxu0
    %v1705 = vadd.f32 %v1258, %v1704
    %1706 = vmatprep.mubr.bf16.mxu0 0
    %1707 = vmatmul.mubr.bf16.gmra.mrb[0].mxu0 %v1168
    %v1708 = vpop.f32.mrb[0].mxu0
    %v1709 = vadd.f32 %v1254, %v1708
    %v1710 = vpop.f32.mrb[0].mxu0
    %v1711 = vadd.f32 %v1258, %v1710
    %v1712 = vpop.f32.mrb[0].mxu0
    %v1713 = vadd.f32 %v1254, %v1712
    %v1714 = vpop.f32.mrb[0].mxu0
    %v1715 = vadd.f32 %v1258, %v1714
    %1716 = vdwg.mxu0
    %1717 = vmatprep.subr.bf16.mxu0 0
    %1718 = vmatpush1.bf16.msra.mxu0 %v1452
    %1719 = vmatprep.subr.bf16.mxu0 0
    %1720 = vmatpush1.bf16.msra.mxu0 %v1459
    %1721 = vmatprep.subr.bf16.mxu0 0
    %1722 = vmatpush1.bf16.msra.mxu0 %v1466
    %1723 = vmatprep.subr.bf16.mxu0 0
    %1724 = vmatpush1.bf16.msra.mxu0 %v1473
    %1725 = vmatprep.subr.bf16.mxu0 0
    %1726 = vmatpush1.bf16.msra.mxu0 %v1480
    %1727 = vmatprep.subr.bf16.mxu0 0
    %1728 = vmatpush1.bf16.msra.mxu0 %v1487
    %1729 = vmatprep.subr.bf16.mxu0 0
    %1730 = vmatpush1.bf16.msra.mxu0 %v1494
    %1731 = vmatprep.subr.bf16.mxu0 0
    %1732 = vmatpush1.bf16.msra.mxu0 %v1501
    %1733 = vmatprep.subr.bf16.mxu0 0
    %1734 = vmatpush1.bf16.msra.mxu0 0
    %1735 = vmatprep.subr.bf16.mxu0 0
    %1736 = vmatpush1.bf16.msra.mxu0 0
    %1737 = vmatprep.subr.bf16.mxu0 0
    %1738 = vmatpush1.bf16.msra.mxu0 0
    %1739 = vmatprep.subr.bf16.mxu0 0
    %1740 = vmatpush1.bf16.msra.mxu0 0
    %1741 = vmatprep.subr.bf16.mxu0 0
    %1742 = vmatpush1.bf16.msra.mxu0 0
    %1743 = vmatprep.subr.bf16.mxu0 0
    %1744 = vmatpush1.bf16.msra.mxu0 0
    %1745 = vmatprep.subr.bf16.mxu0 0
    %1746 = vmatpush1.bf16.msra.mxu0 0
    %1747 = vmatprep.subr.bf16.mxu0 0
    %1748 = vmatpush1.bf16.msra.mxu0 0
    %1749 = vmatprep.mubr.bf16.mxu0 0
    %1750 = vmatmul.mubr.bf16.gmra.mrb[0].mxu0 %v1167
    %v1751 = vpop.f32.mrb[0].mxu0
    %v1752 = vadd.f32 %v1262, %v1751
    %v1753 = vpop.f32.mrb[0].mxu0
    %v1754 = vpop.f32.mrb[0].mxu0
    %v1755 = vadd.f32 %v1262, %v1754
    %v1756 = vpop.f32.mrb[0].mxu0
    %1757 = vmatprep.mubr.bf16.mxu0 0
    %1758 = vmatmul.mubr.bf16.gmra.mrb[0].mxu0 %v1168
    %v1759 = vpop.f32.mrb[0].mxu0
    %v1760 = vadd.f32 %v1262, %v1759
    %v1761 = vpop.f32.mrb[0].mxu0
    %v1762 = vpop.f32.mrb[0].mxu0
    %v1763 = vadd.f32 %v1262, %v1762
    %v1764 = vpop.f32.mrb[0].mxu0
    %1765 = vdwg.mxu0
    %v1766 = vsub.f32 0.0, %v1593
    %v1767 = vsub.f32 0.0, %v1595
    %v1768 = vsub.f32 0.0, %v1646
    %v1769 = vsub.f32 0.0, %v1648
    %v1770 = vsub.f32 0.0, %v1699
    %v1771 = vsub.f32 0.0, %v1701
    %v1772 = vsub.f32 0.0, %v1752
    %v1773 = vsub.f32 0.0, %v1597
    %v1774 = vsub.f32 0.0, %v1599
    %v1775 = vsub.f32 0.0, %v1650
    %v1776 = vsub.f32 0.0, %v1652
    %v1777 = vsub.f32 0.0, %v1703
    %v1778 = vsub.f32 0.0, %v1705
    %v1779 = vsub.f32 0.0, %v1755
    %v1780 = vsub.f32 0.0, %v1603
    %v1781 = vsub.f32 0.0, %v1605
    %v1782 = vsub.f32 0.0, %v1656
    %v1783 = vsub.f32 0.0, %v1658
    %v1784 = vsub.f32 0.0, %v1709
    %v1785 = vsub.f32 0.0, %v1711
    %v1786 = vsub.f32 0.0, %v1760
    %v1787 = vsub.f32 0.0, %v1607
    %v1788 = vsub.f32 0.0, %v1609
    %v1789 = vsub.f32 0.0, %v1660
    %v1790 = vsub.f32 0.0, %v1662
    %v1791 = vsub.f32 0.0, %v1713
    %v1792 = vsub.f32 0.0, %v1715
    %v1793 = vsub.f32 0.0, %v1763
    %v1794 = vmul.f32 %v1766, 1.442695
    %v1795 = vpow.pop %v1794
    %v1796 = vmul.f32 %v1767, 1.442695
    %v1797 = vpow.pop %v1796
    %v1798 = vmul.f32 %v1768, 1.442695
    %v1799 = vpow.pop %v1798
    %v1800 = vmul.f32 %v1769, 1.442695
    %v1801 = vpow.pop %v1800
    %v1802 = vmul.f32 %v1770, 1.442695
    %v1803 = vpow.pop %v1802
    %v1804 = vmul.f32 %v1771, 1.442695
    %v1805 = vpow.pop %v1804
    %v1806 = vmul.f32 %v1772, 1.442695
    %v1807 = vpow.pop %v1806
    %v1808 = vmul.f32 %v1773, 1.442695
    %v1809 = vpow.pop %v1808
    %v1810 = vmul.f32 %v1774, 1.442695
    %v1811 = vpow.pop %v1810
    %v1812 = vmul.f32 %v1775, 1.442695
    %v1813 = vpow.pop %v1812
    %v1814 = vmul.f32 %v1776, 1.442695
    %v1815 = vpow.pop %v1814
    %v1816 = vmul.f32 %v1777, 1.442695
    %v1817 = vpow.pop %v1816
    %v1818 = vmul.f32 %v1778, 1.442695
    %v1819 = vpow.pop %v1818
    %v1820 = vmul.f32 %v1779, 1.442695
    %v1821 = vpow.pop %v1820
    %v1822 = vmul.f32 %v1780, 1.442695
    %v1823 = vpow.pop %v1822
    %v1824 = vmul.f32 %v1781, 1.442695
    %v1825 = vpow.pop %v1824
    %v1826 = vmul.f32 %v1782, 1.442695
    %v1827 = vpow.pop %v1826
    %v1828 = vmul.f32 %v1783, 1.442695
    %v1829 = vpow.pop %v1828
    %v1830 = vmul.f32 %v1784, 1.442695
    %v1831 = vpow.pop %v1830
    %v1832 = vmul.f32 %v1785, 1.442695
    %v1833 = vpow.pop %v1832
    %v1834 = vmul.f32 %v1786, 1.442695
    %v1835 = vpow.pop %v1834
    %v1836 = vmul.f32 %v1787, 1.442695
    %v1837 = vpow.pop %v1836
    %v1838 = vmul.f32 %v1788, 1.442695
    %v1839 = vpow.pop %v1838
    %v1840 = vmul.f32 %v1789, 1.442695
    %v1841 = vpow.pop %v1840
    %v1842 = vmul.f32 %v1790, 1.442695
    %v1843 = vpow.pop %v1842
    %v1844 = vmul.f32 %v1791, 1.442695
    %v1845 = vpow.pop %v1844
    %v1846 = vmul.f32 %v1792, 1.442695
    %v1847 = vpow.pop %v1846
    %v1848 = vmul.f32 %v1793, 1.442695
    %v1849 = vpow.pop %v1848
    %v1850 = vadd.f32 %v1795, 1.0
    %v1851 = vadd.f32 %v1797, 1.0
    %v1852 = vadd.f32 %v1799, 1.0
    %v1853 = vadd.f32 %v1801, 1.0
    %v1854 = vadd.f32 %v1803, 1.0
    %v1855 = vadd.f32 %v1805, 1.0
    %v1856 = vadd.f32 %v1807, 1.0
    %v1857 = vadd.f32 %v1809, 1.0
    %v1858 = vadd.f32 %v1811, 1.0
    %v1859 = vadd.f32 %v1813, 1.0
    %v1860 = vadd.f32 %v1815, 1.0
    %v1861 = vadd.f32 %v1817, 1.0
    %v1862 = vadd.f32 %v1819, 1.0
    %v1863 = vadd.f32 %v1821, 1.0
    %v1864 = vadd.f32 %v1823, 1.0
    %v1865 = vadd.f32 %v1825, 1.0
    %v1866 = vadd.f32 %v1827, 1.0
    %v1867 = vadd.f32 %v1829, 1.0
    %v1868 = vadd.f32 %v1831, 1.0
    %v1869 = vadd.f32 %v1833, 1.0
    %v1870 = vadd.f32 %v1835, 1.0
    %v1871 = vadd.f32 %v1837, 1.0
    %v1872 = vadd.f32 %v1839, 1.0
    %v1873 = vadd.f32 %v1841, 1.0
    %v1874 = vadd.f32 %v1843, 1.0
    %v1875 = vadd.f32 %v1845, 1.0
    %v1876 = vadd.f32 %v1847, 1.0
    %v1877 = vadd.f32 %v1849, 1.0
    %v1878 = vrcp.pop %v1850
    %v1879 = vrcp.pop %v1851
    %v1880 = vrcp.pop %v1852
    %v1881 = vrcp.pop %v1853
    %v1882 = vrcp.pop %v1854
    %v1883 = vrcp.pop %v1855
    %v1884 = vrcp.pop %v1856
    %v1885 = vrcp.pop %v1857
    %v1886 = vrcp.pop %v1858
    %v1887 = vrcp.pop %v1859
    %v1888 = vrcp.pop %v1860
    %v1889 = vrcp.pop %v1861
    %v1890 = vrcp.pop %v1862
    %v1891 = vrcp.pop %v1863
    %v1892 = vrcp.pop %v1864
    %v1893 = vrcp.pop %v1865
    %v1894 = vrcp.pop %v1866
    %v1895 = vrcp.pop %v1867
    %v1896 = vrcp.pop %v1868
    %v1897 = vrcp.pop %v1869
    %v1898 = vrcp.pop %v1870
    %v1899 = vrcp.pop %v1871
    %v1900 = vrcp.pop %v1872
    %v1901 = vrcp.pop %v1873
    %v1902 = vrcp.pop %v1874
    %v1903 = vrcp.pop %v1875
    %v1904 = vrcp.pop %v1876
    %v1905 = vrcp.pop %v1877
    %v1906 = vpack.c.bf16 %v1885, %v1878
    %v1907 = vpack.c.bf16 %v1886, %v1879
    %v1908 = vpack.c.bf16 %v1887, %v1880
    %v1909 = vpack.c.bf16 %v1888, %v1881
    %v1910 = vpack.c.bf16 %v1889, %v1882
    %v1911 = vpack.c.bf16 %v1890, %v1883
    %v1912 = vpack.c.bf16 %v1891, %v1884
    %v1913 = vpack.c.bf16 %v1899, %v1892
    %v1914 = vpack.c.bf16 %v1900, %v1893
    %v1915 = vpack.c.bf16 %v1901, %v1894
    %v1916 = vpack.c.bf16 %v1902, %v1895
    %v1917 = vpack.c.bf16 %v1903, %v1896
    %v1918 = vpack.c.bf16 %v1904, %v1897
    %v1919 = vpack.c.bf16 %v1905, %v1898
    %v1934 = vunpack.c.l.b16 %v1906
    %v1935 = vunpack.c.l.b16 %v1907
    %v1936 = vunpack.c.l.b16 %v1908
    %v1937 = vunpack.c.l.b16 %v1909
    %v1938 = vunpack.c.l.b16 %v1910
    %v1939 = vunpack.c.l.b16 %v1911
    %v1940 = vunpack.c.l.b16 %v1912
    %v1941 = vunpack.c.h.b16 %v1906
    %v1942 = vunpack.c.h.b16 %v1907
    %v1943 = vunpack.c.h.b16 %v1908
    %v1944 = vunpack.c.h.b16 %v1909
    %v1945 = vunpack.c.h.b16 %v1910
    %v1946 = vunpack.c.h.b16 %v1911
    %v1947 = vunpack.c.h.b16 %v1912
    %v1948 = vunpack.c.l.b16 %v1913
    %v1949 = vunpack.c.l.b16 %v1914
    %v1950 = vunpack.c.l.b16 %v1915
    %v1951 = vunpack.c.l.b16 %v1916
    %v1952 = vunpack.c.l.b16 %v1917
    %v1953 = vunpack.c.l.b16 %v1918
    %v1954 = vunpack.c.l.b16 %v1919
    %v1955 = vunpack.c.h.b16 %v1913
    %v1956 = vunpack.c.h.b16 %v1914
    %v1957 = vunpack.c.h.b16 %v1915
    %v1958 = vunpack.c.h.b16 %v1916
    %v1959 = vunpack.c.h.b16 %v1917
    %v1960 = vunpack.c.h.b16 %v1918
    %v1961 = vunpack.c.h.b16 %v1919
    %v1962 = vpack.c.b16 %v1935, %v1934
    %v1963 = vpack.c.b16 %v1937, %v1936
    %v1964 = vpack.c.b16 %v1939, %v1938
    %v1965 = vpack.c.b16 %v1940, %v1940
    %v1966 = vpack.c.b16 %v1942, %v1941
    %v1967 = vpack.c.b16 %v1944, %v1943
    %v1968 = vpack.c.b16 %v1946, %v1945
    %v1969 = vpack.c.b16 %v1947, %v1947
    %v1970 = vpack.c.b16 %v1949, %v1948
    %v1971 = vpack.c.b16 %v1951, %v1950
    %v1972 = vpack.c.b16 %v1953, %v1952
    %v1973 = vpack.c.b16 %v1954, %v1954
    %v1974 = vpack.c.b16 %v1956, %v1955
    %v1975 = vpack.c.b16 %v1958, %v1957
    %v1976 = vpack.c.b16 %v1960, %v1959
    %v1977 = vpack.c.b16 %v1961, %v1961
    %1994 = vst [vmem:[#allocation2] sm:$0xff] %v1962
    %1995 = vst [vmem:[#allocation2 + $0x8] sm:$0xff] %v1963
    %1996 = vst [vmem:[#allocation2 + $0x10] sm:$0xff] %v1964
    %vm1997 = vcmask 125952
    %1998 = vst.msk [vmem:[#allocation2 + $0x18] sm:$0xf] %vm1997, %v1965
    %1999 = vst [vmem:[#allocation2 + $0x1c] sm:$0xff] %v1966
    %2000 = vst [vmem:[#allocation2 + $0x24] sm:$0xff] %v1967
    %2001 = vst [vmem:[#allocation2 + $0x2c] sm:$0xff] %v1968
    %2002 = vst.msk [vmem:[#allocation2 + $0x34] sm:$0xf] %vm1997, %v1969
    %2003 = vst [vmem:[#allocation2 + $0x38] sm:$0xff] %v1970
    %2004 = vst [vmem:[#allocation2 + $0x40] sm:$0xff] %v1971
    %2005 = vst [vmem:[#allocation2 + $0x48] sm:$0xff] %v1972
    %2006 = vst.msk [vmem:[#allocation2 + $0x50] sm:$0xf] %vm1997, %v1973
    %2007 = vst [vmem:[#allocation2 + $0x54] sm:$0xff] %v1974
    %2008 = vst [vmem:[#allocation2 + $0x5c] sm:$0xff] %v1975
    %2009 = vst [vmem:[#allocation2 + $0x64] sm:$0xff] %v1976
    %2010 = vst.msk [vmem:[#allocation2 + $0x6c] sm:$0xf] %vm1997, %v1977
    // Predicated region
    $region38: #{tpu_custom_call.1} parent=1 // pred_check
      _
    $region39: #{tpu_custom_call.1} parent=1 // pred_check_branch
      %2012 = sbr.rel (0) target = $region41
    $region40: #{tpu_custom_call.1} parent=1 // pred_region
      %s2014 = ssub.s32 1792, 1792
      %2015 = vsyncadd [#allocation3], %s2014
      %s2016 = sshll.u32 [#allocation2], 4
      %s2017 = int_to_ptr.vmem [resolvable:$true] %s2016
      %2022 = dma.vmem_to_hbm [thread:$0]  %s2017, 1792, %s9, [#allocation3], 448, 448, 28
    $region41: #{tpu_custom_call.1} parent=1 // pred_fallthru
      _
    // Predicated region
    $region42: #{tpu_custom_call.1} parent=1 // pred_check
      _
    $region43: #{tpu_custom_call.1} parent=1 // pred_check_branch
      %2024 = sbr.rel (0) target = $region45
    $region44: #{tpu_custom_call.1} parent=1 // pred_region
      %2025 = dma.done [#allocation3], 1792
    $region45: #{tpu_custom_call.1} parent=1 // pred_fallthru
      _
    %2026 = vsyncpa [#allocation3], 1

</llo_original>
